<compile_context>
chip_gen: v7x
topology: tpu7x:2x2x1
jax: 0.10.0
libtpu: 0.0.40
codegen_flags: <defaults>
</compile_context>

<pallas_src>
import functools

import jax
import jax.numpy as jnp
from jax.experimental import pallas as pl
from jax.experimental.pallas import tpu as pltpu


# ------------------------------ fused TCN kernel ------------------------------

def _tcn_kernel(*refs, L, K, T, P, Nb):
    """Fused TemporalConvNet2D forward for one batch tile.

    refs = (x, mask, w1_0, b1_0, w2_0, b2_0, ..., w1_{L-1}, b1_{L-1}, w2_{L-1},
            b2_{L-1}, out, act_slab, h1_slab)

    x        : (Nb, T, WCp)        dense batch tile, lane dim padded to 128
    mask     : (Nb*(T+P), 1) f32   0 on per-sample causal-halo rows, 1 on data
    w*_l     : (K, WCp, WCp)       per-tap shifted-block-diagonal weights
    b*_l     : (1, WCp)            packed bias (f32)
    out      : (Nb, T, WCp)
    act_slab : (P + Nb*(T+P), WCp) f32  current activation (layer input/output)
    h1_slab  : (P + Nb*(T+P), WCp) f32  intra-block temporary h1

    Slab layout: P global zero rows (so shifted tap slices never start < 0),
    then per sample: P causal-halo zero rows + T data rows.
    """
    assert len(refs) == 4 * L + 5
    x_ref, mask_ref = refs[0], refs[1]
    wb = refs[2:2 + 4 * L]
    o_ref = refs[2 + 4 * L]
    act, tmp = refs[3 + 4 * L], refs[4 + 4 * L]

    Bk = T + P           # rows per sample block
    M = Nb * Bk          # matmul M: the whole batch tile at once

    # Build the input slab.  Full-slab zeroing is a few KB of aligned,
    # full-lane-width stores; doing it every grid step keeps the kernel correct
    # on every v7x core under "parallel" grid partitioning (no program_id==0
    # special case) and costs ~nothing next to the matmuls.
    act[...] = jnp.zeros(act.shape, act.dtype)
    tmp[...] = jnp.zeros(tmp.shape, tmp.dtype)
    for n in range(Nb):
        act[pl.ds(P + n * Bk + P, T), :] = x_ref[n].astype(act.dtype)

    mask = mask_ref[...]     # (M, 1), broadcasts over the 128 lanes

    def conv(src, w_ref, b_ref, d):
        # Causal dilated time-conv + Chomp2d + bias.  Output slab row r reads
        # src rows r - p + k*d; the Chomp2d width shift is baked into the
        # shifted-block-diagonal weights, so each tap is one lane contraction.
        p = (K - 1) * d
        acc = None
        for k in range(K):   # K is tiny & static (kernel_size)
            lhs = src[pl.ds(P - p + k * d, M), :].astype(w_ref.dtype)
            term = jnp.dot(lhs, w_ref[k], preferred_element_type=jnp.float32)
            acc = term if acc is None else acc + term
        return acc + b_ref[...]

    for l in range(L):
        d = 2 ** l
        w1_ref, b1_ref, w2_ref, b2_ref = wb[4 * l:4 * l + 4]
        # conv1 + chomp1 + relu1 (dropout1 is identity in eval mode).  The row
        # mask re-zeroes the causal halo rows so conv2's shifted reads see zeros.
        tmp[pl.ds(P, M), :] = jnp.maximum(conv(act, w1_ref, b1_ref, d), 0.0) * mask
        # conv2 + chomp2 + relu2 + residual + final relu, written back into `act`
        res = act[pl.ds(P, M), :]
        h2 = jnp.maximum(conv(tmp, w2_ref, b2_ref, d), 0.0)
        act[pl.ds(P, M), :] = jnp.maximum(h2 + res, 0.0) * mask
        # TODO(synk): nn.Dropout(p=0.2) is identity in eval mode (not modeled).

    for n in range(Nb):
        o_ref[n] = act[pl.ds(P + n * Bk + P, T), :].astype(o_ref.dtype)


# ------------------------------- forward wrapper -------------------------------

def _round_up(n, m):
    return ((n + m - 1) // m) * m


def temporal_conv_net_2d(x, packed_params, *, kernel_size=2,
                         compute_dtype=jnp.float32, batch_tile=None):
    """Forward pass.  x: (N, T, C, W) — same convention as the PyTorch module."""
    N, T, C, W = x.shape
    L = len(packed_params)
    K = kernel_size
    P = (K - 1) * 2 ** (L - 1)             # largest per-layer causal halo
    WC = W * C
    WCp = packed_params[0][0].shape[-1]    # lane-padded packed width (mult of 128)
    Nb = N if batch_tile is None else batch_tile
    assert N % Nb == 0, "batch_tile must divide the batch"
    Bk = T + P
    R = P + Nb * Bk                        # VMEM slab rows per grid step

    # Lane-dense packed channels-last layout (N, T, W*C), zero-padded to WCp lanes.
    h = jnp.transpose(x, (0, 1, 3, 2)).reshape(N, T, WC)
    h = jnp.pad(h, ((0, 0), (0, 0), (0, WCp - WC))).astype(compute_dtype)

    # Per-sample-block row mask: 0 on the P causal-halo rows, 1 on the T data rows.
    row = jnp.arange(Nb * Bk, dtype=jnp.int32) % Bk
    mask = (row >= P).astype(jnp.float32).reshape(Nb * Bk, 1)

    flat_wb = [a for layer in packed_params for a in layer]

    # Weights/bias/mask have constant index_maps (fetched once per grid step).
    # TODO(synk): for multi-step grids on v7x, add pipeline_mode=pl.Buffered(1)
    #             on these specs to single-buffer the never-changing blocks.
    in_specs = [
        pl.BlockSpec((Nb, T, WCp), lambda g: (g, 0, 0)),
        pl.BlockSpec((Nb * Bk, 1), lambda g: (0, 0)),
    ]
    for _ in range(L):
        in_specs += [
            pl.BlockSpec((K, WCp, WCp), lambda g: (0, 0, 0)),
            pl.BlockSpec((1, WCp), lambda g: (0, 0)),
            pl.BlockSpec((K, WCp, WCp), lambda g: (0, 0, 0)),
            pl.BlockSpec((1, WCp), lambda g: (0, 0)),
        ]

    kernel = functools.partial(_tcn_kernel, L=L, K=K, T=T, P=P, Nb=Nb)

    out_padded = pl.pallas_call(
        kernel,
        grid=(N // Nb,),                   # one step for the whole batch here
        in_specs=in_specs,
        out_specs=pl.BlockSpec((Nb, T, WCp), lambda g: (g, 0, 0)),
        out_shape=jax.ShapeDtypeStruct((N, T, WCp), compute_dtype),
        scratch_shapes=[pltpu.VMEM((R, WCp), jnp.float32),    # activation slab
                        pltpu.VMEM((R, WCp), jnp.float32)],   # h1 slab
        compiler_params=pltpu.CompilerParams(
            # "parallel" only helps v7x's two TensorCores on multi-step grids;
            # near-zero impact on v5e/v6e.  No vmem_limit_bytes request: actual
            # VMEM use here is ~1-2 MiB, well under every chip's default limit.
            dimension_semantics=("parallel",),
        ),
    )(h, mask, *flat_wb)

    out = out_padded[..., :WC].reshape(N, T, W, C).astype(x.dtype)
    return jnp.transpose(out, (0, 1, 3, 2))                  # back to (N, T, C, W)


# --------------------------- parameters & packing ---------------------------

def init_params(key, num_inputs, num_channels, kernel_size):
    """Raw per-layer params: w as (K, Cin, Cout) (== torch w[:, :, k, 0].T), bias.

    Mirrors xavier_normal_(gain=0.02) weights and the default Conv2d bias init.
    """
    params = []
    for i, out_ch in enumerate(num_channels):
        in_ch = num_inputs if i == 0 else num_channels[i - 1]
        fan_in = in_ch * kernel_size
        fan_out = out_ch * kernel_size
        std = 0.02 * (2.0 / (fan_in + fan_out)) ** 0.5
        key, k1, k2, k3, k4 = jax.random.split(key, 5)
        w1 = std * jax.random.normal(k1, (kernel_size, in_ch, out_ch), jnp.float32)
        w2 = std * jax.random.normal(k2, (kernel_size, out_ch, out_ch), jnp.float32)
        bound = 1.0 / (fan_in ** 0.5)
        b1 = jax.random.uniform(k3, (out_ch,), jnp.float32, -bound, bound)
        b2 = jax.random.uniform(k4, (out_ch,), jnp.float32, -bound, bound)
        params.append((w1, b1, w2, b2))
    return params


def _pack_conv(w_kio, bias, W, p, WCp, dtype):
    """(K, Cin, Cout) -> (K, WCp, WCp) shifted-block-diagonal matrices that apply
    channel mixing AND the Chomp2d width shift (output width w reads input width
    w - p, zero-fill for w < p) in a single lane contraction.  Zero-padded to the
    lane-dense width WCp (multiple of 128); bias packed+padded to (1, WCp) f32."""
    K, Cin, Cout = w_kio.shape
    eye = jnp.eye(W, dtype=jnp.float32)
    shift = jnp.pad(eye, ((0, 0), (p, 0)))[:, :W]    # shift[v, w] = (v == w - p)
    big = jnp.einsum("vw,kio->kviwo", shift, w_kio).reshape(K, W * Cin, W * Cout)
    big = jnp.pad(big, ((0, 0), (0, WCp - W * Cin), (0, WCp - W * Cout)))
    b = jnp.pad(jnp.tile(bias, (W,)), (0, WCp - W * Cout)).reshape(1, WCp)
    return big.astype(dtype), b.astype(jnp.float32)


def pack_params(params, W, kernel_size, compute_dtype):
    """Pack each layer's (w1, b1, w2, b2) into lane-dense MXU-ready blocks."""
    c0 = params[0][0].shape[1]
    for (w1, _, w2, _) in params:
        assert w1.shape[1] == w1.shape[2] == w2.shape[1] == w2.shape[2] == c0, (
            "TemporalBlock2D residual (and the shared VMEM slab) require "
            "n_inputs == n_outputs for every layer")
    WCp = _round_up(W * c0, 128)
    packed = []
    for i, (w1, b1, w2, b2) in enumerate(params):
        p = (kernel_size - 1) * (2 ** i)
        packed.append(_pack_conv(w1, b1, W, p, WCp, compute_dtype)
                      + _pack_conv(w2, b2, W, p, WCp, compute_dtype))
    return packed


# ----------------------------- pure-JAX reference -----------------------------

def _ref_net(x, params, kernel_size=2):
    """Pure-JAX reference of TemporalConvNet2D.forward (eval mode)."""
    h = jnp.transpose(x, (0, 2, 1, 3))                       # (N, C, T, W) == NCHW
    for i, (w1, b1, w2, b2) in enumerate(params):
        d = 2 ** i
        p = (kernel_size - 1) * d

        def conv_chomp_relu(inp, w_kio, b):
            w_oihw = jnp.transpose(w_kio, (2, 1, 0))[..., None]   # (O, I, K, 1)
            y = jax.lax.conv_general_dilated(
                inp, w_oihw, window_strides=(1, 1),
                padding=((p, p), (p, p)), rhs_dilation=(d, d),
                dimension_numbers=("NCHW", "OIHW", "NCHW"),
                precision=jax.lax.Precision.HIGHEST)
            y = y + b[None, :, None, None]
            y = y[:, :, :-p, :-2 * p]                         # Chomp2d
            return jnp.maximum(y, 0.0)

        o = conv_chomp_relu(h, w1, b1)
        o = conv_chomp_relu(o, w2, b2)
        h = jnp.maximum(o + h, 0.0)
    return jnp.transpose(h, (0, 2, 1, 3))


# ----------------------------------- main -----------------------------------

if __name__ == "__main__":
    key = jax.random.PRNGKey(0)
    kx, kp = jax.random.split(key)

    N, T, C, W = 2, 8, 4, 16            # batch, seq (time), channels, width
    num_channels = [4, 4]               # == C (torch residual has no downsample)
    kernel_size = 2

    x = jax.random.normal(kx, (N, T, C, W), jnp.float32)
    params = init_params(kp, C, num_channels, kernel_size)
    ref = jax.block_until_ready(_ref_net(x, params, kernel_size=kernel_size))

    # --- float32 path (tolerance covers worst-case MXU f32-via-bf16 rounding) ---
    packed_f32 = pack_params(params, W, kernel_size, jnp.float32)
    fwd_f32 = jax.jit(functools.partial(
        temporal_conv_net_2d, kernel_size=kernel_size, compute_dtype=jnp.float32))
    out = jax.block_until_ready(fwd_f32(x, packed_f32))
    assert out.shape == (N, T, C, W), out.shape
    assert jnp.allclose(out, ref, atol=2e-3, rtol=2e-3), \
        float(jnp.max(jnp.abs(out - ref)))

    # --- bf16 MXU operands, f32 scratch / accumulation / epilogue ---
    packed_bf16 = pack_params(params, W, kernel_size, jnp.bfloat16)
    fwd_bf16 = jax.jit(functools.partial(
        temporal_conv_net_2d, kernel_size=kernel_size, compute_dtype=jnp.bfloat16))
    out_bf16 = jax.block_until_ready(fwd_bf16(x, packed_bf16))
    assert out_bf16.shape == (N, T, C, W)
    assert jnp.allclose(out_bf16, ref, atol=1e-1, rtol=1e-1), \
        float(jnp.max(jnp.abs(out_bf16 - ref)))

    print("KERNEL_OK")
</pallas_src>

<mosaic_0001>
module attributes {stable_mosaic.version = 11 : i64} {
  func.func @_tcn_kernel(%arg0: i32, %arg1: memref<2x8x128xf32, #tpu.memory_space<vmem>>, %arg2: memref<20x1xf32, #tpu.memory_space<vmem>>, %arg3: memref<2x128x128xf32, #tpu.memory_space<vmem>>, %arg4: memref<1x128xf32, #tpu.memory_space<vmem>>, %arg5: memref<2x128x128xf32, #tpu.memory_space<vmem>>, %arg6: memref<1x128xf32, #tpu.memory_space<vmem>>, %arg7: memref<2x128x128xf32, #tpu.memory_space<vmem>>, %arg8: memref<1x128xf32, #tpu.memory_space<vmem>>, %arg9: memref<2x128x128xf32, #tpu.memory_space<vmem>>, %arg10: memref<1x128xf32, #tpu.memory_space<vmem>>, %arg11: memref<2x8x128xf32, #tpu.memory_space<vmem>>, %arg12: memref<22x128xf32, #tpu.memory_space<vmem>>, %arg13: memref<22x128xf32, #tpu.memory_space<vmem>>) attributes {dimension_semantics = [#tpu.dimension_semantics<parallel>], iteration_bounds = array<i64: 1>, scalar_prefetch = 0 : i64, scratch_operands = 2 : i64, tpu.core_type = #tpu.core_type<tc>, window_params = [{transform_indices = @transform_0, window_bounds = array<i64: 2, 8, 128>}, {pipeline_mode = #tpu.pipeline_mode<synchronous>, transform_indices = @transform_1, window_bounds = array<i64: 20, 1>}, {pipeline_mode = #tpu.pipeline_mode<synchronous>, transform_indices = @transform_2, window_bounds = array<i64: 2, 128, 128>}, {pipeline_mode = #tpu.pipeline_mode<synchronous>, transform_indices = @transform_3, window_bounds = array<i64: 1, 128>}, {pipeline_mode = #tpu.pipeline_mode<synchronous>, transform_indices = @transform_4, window_bounds = array<i64: 2, 128, 128>}, {pipeline_mode = #tpu.pipeline_mode<synchronous>, transform_indices = @transform_5, window_bounds = array<i64: 1, 128>}, {pipeline_mode = #tpu.pipeline_mode<synchronous>, transform_indices = @transform_6, window_bounds = array<i64: 2, 128, 128>}, {pipeline_mode = #tpu.pipeline_mode<synchronous>, transform_indices = @transform_7, window_bounds = array<i64: 1, 128>}, {pipeline_mode = #tpu.pipeline_mode<synchronous>, transform_indices = @transform_8, window_bounds = array<i64: 2, 128, 128>}, {pipeline_mode = #tpu.pipeline_mode<synchronous>, transform_indices = @transform_9, window_bounds = array<i64: 1, 128>}, {transform_indices = @transform_10, window_bounds = array<i64: 2, 8, 128>}]} {
    %cst = arith.constant 0.000000e+00 : f32
    %0 = vector.broadcast %cst : f32 to vector<22x128xf32>
    %c0 = arith.constant 0 : index
    %c0_0 = arith.constant 0 : index
    %1 = vector.load %arg12[%c0, %c0_0] : memref<22x128xf32, #tpu.memory_space<vmem>>, vector<22x128xf32>
    tpu.vector_store %arg12[%c0, %c0_0], %0 {strides = array<i32>} : memref<22x128xf32, #tpu.memory_space<vmem>>, vector<22x128xf32>,
    %cst_1 = arith.constant 0.000000e+00 : f32
    %2 = vector.broadcast %cst_1 : f32 to vector<22x128xf32>
    %c0_2 = arith.constant 0 : index
    %c0_3 = arith.constant 0 : index
    %3 = vector.load %arg13[%c0_2, %c0_3] : memref<22x128xf32, #tpu.memory_space<vmem>>, vector<22x128xf32>
    tpu.vector_store %arg13[%c0_2, %c0_3], %2 {strides = array<i32>} : memref<22x128xf32, #tpu.memory_space<vmem>>, vector<22x128xf32>,
    %c0_4 = arith.constant 0 : index
    %c0_5 = arith.constant 0 : index
    %c0_6 = arith.constant 0 : index
    %4 = vector.load %arg1[%c0_4, %c0_5, %c0_6] : memref<2x8x128xf32, #tpu.memory_space<vmem>>, vector<1x8x128xf32>
    %5 = vector.shape_cast %4 : vector<1x8x128xf32> to vector<8x128xf32>
    %c4 = arith.constant 4 : index
    %c0_7 = arith.constant 0 : index
    %6 = vector.load %arg12[%c4, %c0_7] : memref<22x128xf32, #tpu.memory_space<vmem>>, vector<8x128xf32>
    tpu.vector_store %arg12[%c4, %c0_7], %5 {strides = array<i32>} : memref<22x128xf32, #tpu.memory_space<vmem>>, vector<8x128xf32>,
    %c1 = arith.constant 1 : index
    %c0_8 = arith.constant 0 : index
    %c0_9 = arith.constant 0 : index
    %7 = vector.load %arg1[%c1, %c0_8, %c0_9] : memref<2x8x128xf32, #tpu.memory_space<vmem>>, vector<1x8x128xf32>
    %8 = vector.shape_cast %7 : vector<1x8x128xf32> to vector<8x128xf32>
    %c14 = arith.constant 14 : index
    %c0_10 = arith.constant 0 : index
    %9 = vector.load %arg12[%c14, %c0_10] : memref<22x128xf32, #tpu.memory_space<vmem>>, vector<8x128xf32>
    tpu.vector_store %arg12[%c14, %c0_10], %8 {strides = array<i32>} : memref<22x128xf32, #tpu.memory_space<vmem>>, vector<8x128xf32>,
    %c0_11 = arith.constant 0 : index
    %c0_12 = arith.constant 0 : index
    %10 = vector.load %arg2[%c0_11, %c0_12] : memref<20x1xf32, #tpu.memory_space<vmem>>, vector<20x1xf32>
    %c1_13 = arith.constant 1 : index
    %c0_14 = arith.constant 0 : index
    %11 = vector.load %arg12[%c1_13, %c0_14] : memref<22x128xf32, #tpu.memory_space<vmem>>, vector<20x128xf32>
    %c0_15 = arith.constant 0 : index
    %c0_16 = arith.constant 0 : index
    %c0_17 = arith.constant 0 : index
    %12 = vector.load %arg3[%c0_15, %c0_16, %c0_17] : memref<2x128x128xf32, #tpu.memory_space<vmem>>, vector<1x128x128xf32>
    %13 = vector.shape_cast %12 : vector<1x128x128xf32> to vector<128x128xf32>
    %cst_18 = arith.constant dense<0.000000e+00> : vector<20x128xf32>
    %14 = tpu.matmul %11, %13, %cst_18 {dimension_numbers = #tpu.dot_dimension_numbers<[1], [0], [0], [1], [0, 0, 1, 1], [], []>} : vector<20x128xf32>, vector<128x128xf32>, vector<20x128xf32> -> vector<20x128xf32>
    %c2 = arith.constant 2 : index
    %c0_19 = arith.constant 0 : index
    %15 = vector.load %arg12[%c2, %c0_19] : memref<22x128xf32, #tpu.memory_space<vmem>>, vector<20x128xf32>
    %c1_20 = arith.constant 1 : index
    %c0_21 = arith.constant 0 : index
    %c0_22 = arith.constant 0 : index
    %16 = vector.load %arg3[%c1_20, %c0_21, %c0_22] : memref<2x128x128xf32, #tpu.memory_space<vmem>>, vector<1x128x128xf32>
    %17 = vector.shape_cast %16 : vector<1x128x128xf32> to vector<128x128xf32>
    %cst_23 = arith.constant dense<0.000000e+00> : vector<20x128xf32>
    %18 = tpu.matmul %15, %17, %cst_23 {dimension_numbers = #tpu.dot_dimension_numbers<[1], [0], [0], [1], [0, 0, 1, 1], [], []>} : vector<20x128xf32>, vector<128x128xf32>, vector<20x128xf32> -> vector<20x128xf32>
    %19 = arith.addf %14, %18 : vector<20x128xf32>
    %c0_24 = arith.constant 0 : index
    %c0_25 = arith.constant 0 : index
    %20 = vector.load %arg4[%c0_24, %c0_25] : memref<1x128xf32, #tpu.memory_space<vmem>>, vector<1x128xf32>
    %21 = vector.broadcast %20 : vector<1x128xf32> to vector<20x128xf32>
    %22 = arith.addf %19, %21 : vector<20x128xf32>
    %cst_26 = arith.constant 0.000000e+00 : f32
    %23 = vector.broadcast %cst_26 : f32 to vector<20x128xf32>
    %24 = arith.maximumf %22, %23 : vector<20x128xf32>
    %25 = vector.broadcast %10 : vector<20x1xf32> to vector<20x128xf32>
    %26 = arith.mulf %24, %25 : vector<20x128xf32>
    %c2_27 = arith.constant 2 : index
    %c0_28 = arith.constant 0 : index
    %27 = vector.load %arg13[%c2_27, %c0_28] : memref<22x128xf32, #tpu.memory_space<vmem>>, vector<20x128xf32>
    tpu.vector_store %arg13[%c2_27, %c0_28], %26 {strides = array<i32>} : memref<22x128xf32, #tpu.memory_space<vmem>>, vector<20x128xf32>,
    %c2_29 = arith.constant 2 : index
    %c0_30 = arith.constant 0 : index
    %28 = vector.load %arg12[%c2_29, %c0_30] : memref<22x128xf32, #tpu.memory_space<vmem>>, vector<20x128xf32>
    %c1_31 = arith.constant 1 : index
    %c0_32 = arith.constant 0 : index
    %29 = vector.load %arg13[%c1_31, %c0_32] : memref<22x128xf32, #tpu.memory_space<vmem>>, vector<20x128xf32>
    %c0_33 = arith.constant 0 : index
    %c0_34 = arith.constant 0 : index
    %c0_35 = arith.constant 0 : index
    %30 = vector.load %arg5[%c0_33, %c0_34, %c0_35] : memref<2x128x128xf32, #tpu.memory_space<vmem>>, vector<1x128x128xf32>
    %31 = vector.shape_cast %30 : vector<1x128x128xf32> to vector<128x128xf32>
    %cst_36 = arith.constant dense<0.000000e+00> : vector<20x128xf32>
    %32 = tpu.matmul %29, %31, %cst_36 {dimension_numbers = #tpu.dot_dimension_numbers<[1], [0], [0], [1], [0, 0, 1, 1], [], []>} : vector<20x128xf32>, vector<128x128xf32>, vector<20x128xf32> -> vector<20x128xf32>
    %c2_37 = arith.constant 2 : index
    %c0_38 = arith.constant 0 : index
    %33 = vector.load %arg13[%c2_37, %c0_38] : memref<22x128xf32, #tpu.memory_space<vmem>>, vector<20x128xf32>
    %c1_39 = arith.constant 1 : index
    %c0_40 = arith.constant 0 : index
    %c0_41 = arith.constant 0 : index
    %34 = vector.load %arg5[%c1_39, %c0_40, %c0_41] : memref<2x128x128xf32, #tpu.memory_space<vmem>>, vector<1x128x128xf32>
    %35 = vector.shape_cast %34 : vector<1x128x128xf32> to vector<128x128xf32>
    %cst_42 = arith.constant dense<0.000000e+00> : vector<20x128xf32>
    %36 = tpu.matmul %33, %35, %cst_42 {dimension_numbers = #tpu.dot_dimension_numbers<[1], [0], [0], [1], [0, 0, 1, 1], [], []>} : vector<20x128xf32>, vector<128x128xf32>, vector<20x128xf32> -> vector<20x128xf32>
    %37 = arith.addf %32, %36 : vector<20x128xf32>
    %c0_43 = arith.constant 0 : index
    %c0_44 = arith.constant 0 : index
    %38 = vector.load %arg6[%c0_43, %c0_44] : memref<1x128xf32, #tpu.memory_space<vmem>>, vector<1x128xf32>
    %39 = vector.broadcast %38 : vector<1x128xf32> to vector<20x128xf32>
    %40 = arith.addf %37, %39 : vector<20x128xf32>
    %cst_45 = arith.constant 0.000000e+00 : f32
    %41 = vector.broadcast %cst_45 : f32 to vector<20x128xf32>
    %42 = arith.maximumf %40, %41 : vector<20x128xf32>
    %43 = arith.addf %42, %28 : vector<20x128xf32>
    %cst_46 = arith.constant 0.000000e+00 : f32
    %44 = vector.broadcast %cst_46 : f32 to vector<20x128xf32>
    %45 = arith.maximumf %43, %44 : vector<20x128xf32>
    %46 = vector.broadcast %10 : vector<20x1xf32> to vector<20x128xf32>
    %47 = arith.mulf %45, %46 : vector<20x128xf32>
    %c2_47 = arith.constant 2 : index
    %c0_48 = arith.constant 0 : index
    %48 = vector.load %arg12[%c2_47, %c0_48] : memref<22x128xf32, #tpu.memory_space<vmem>>, vector<20x128xf32>
    tpu.vector_store %arg12[%c2_47, %c0_48], %47 {strides = array<i32>} : memref<22x128xf32, #tpu.memory_space<vmem>>, vector<20x128xf32>,
    %c0_49 = arith.constant 0 : index
    %c0_50 = arith.constant 0 : index
    %49 = vector.load %arg12[%c0_49, %c0_50] : memref<22x128xf32, #tpu.memory_space<vmem>>, vector<20x128xf32>
    %c0_51 = arith.constant 0 : index
    %c0_52 = arith.constant 0 : index
    %c0_53 = arith.constant 0 : index
    %50 = vector.load %arg7[%c0_51, %c0_52, %c0_53] : memref<2x128x128xf32, #tpu.memory_space<vmem>>, vector<1x128x128xf32>
    %51 = vector.shape_cast %50 : vector<1x128x128xf32> to vector<128x128xf32>
    %cst_54 = arith.constant dense<0.000000e+00> : vector<20x128xf32>
    %52 = tpu.matmul %49, %51, %cst_54 {dimension_numbers = #tpu.dot_dimension_numbers<[1], [0], [0], [1], [0, 0, 1, 1], [], []>} : vector<20x128xf32>, vector<128x128xf32>, vector<20x128xf32> -> vector<20x128xf32>
    %c2_55 = arith.constant 2 : index
    %c0_56 = arith.constant 0 : index
    %53 = vector.load %arg12[%c2_55, %c0_56] : memref<22x128xf32, #tpu.memory_space<vmem>>, vector<20x128xf32>
    %c1_57 = arith.constant 1 : index
    %c0_58 = arith.constant 0 : index
    %c0_59 = arith.constant 0 : index
    %54 = vector.load %arg7[%c1_57, %c0_58, %c0_59] : memref<2x128x128xf32, #tpu.memory_space<vmem>>, vector<1x128x128xf32>
    %55 = vector.shape_cast %54 : vector<1x128x128xf32> to vector<128x128xf32>
    %cst_60 = arith.constant dense<0.000000e+00> : vector<20x128xf32>
    %56 = tpu.matmul %53, %55, %cst_60 {dimension_numbers = #tpu.dot_dimension_numbers<[1], [0], [0], [1], [0, 0, 1, 1], [], []>} : vector<20x128xf32>, vector<128x128xf32>, vector<20x128xf32> -> vector<20x128xf32>
    %57 = arith.addf %52, %56 : vector<20x128xf32>
    %c0_61 = arith.constant 0 : index
    %c0_62 = arith.constant 0 : index
    %58 = vector.load %arg8[%c0_61, %c0_62] : memref<1x128xf32, #tpu.memory_space<vmem>>, vector<1x128xf32>
    %59 = vector.broadcast %58 : vector<1x128xf32> to vector<20x128xf32>
    %60 = arith.addf %57, %59 : vector<20x128xf32>
    %cst_63 = arith.constant 0.000000e+00 : f32
    %61 = vector.broadcast %cst_63 : f32 to vector<20x128xf32>
    %62 = arith.maximumf %60, %61 : vector<20x128xf32>
    %63 = vector.broadcast %10 : vector<20x1xf32> to vector<20x128xf32>
    %64 = arith.mulf %62, %63 : vector<20x128xf32>
    %c2_64 = arith.constant 2 : index
    %c0_65 = arith.constant 0 : index
    %65 = vector.load %arg13[%c2_64, %c0_65] : memref<22x128xf32, #tpu.memory_space<vmem>>, vector<20x128xf32>
    tpu.vector_store %arg13[%c2_64, %c0_65], %64 {strides = array<i32>} : memref<22x128xf32, #tpu.memory_space<vmem>>, vector<20x128xf32>,
    %c2_66 = arith.constant 2 : index
    %c0_67 = arith.constant 0 : index
    %66 = vector.load %arg12[%c2_66, %c0_67] : memref<22x128xf32, #tpu.memory_space<vmem>>, vector<20x128xf32>
    %c0_68 = arith.constant 0 : index
    %c0_69 = arith.constant 0 : index
    %67 = vector.load %arg13[%c0_68, %c0_69] : memref<22x128xf32, #tpu.memory_space<vmem>>, vector<20x128xf32>
    %c0_70 = arith.constant 0 : index
    %c0_71 = arith.constant 0 : index
    %c0_72 = arith.constant 0 : index
    %68 = vector.load %arg9[%c0_70, %c0_71, %c0_72] : memref<2x128x128xf32, #tpu.memory_space<vmem>>, vector<1x128x128xf32>
    %69 = vector.shape_cast %68 : vector<1x128x128xf32> to vector<128x128xf32>
    %cst_73 = arith.constant dense<0.000000e+00> : vector<20x128xf32>
    %70 = tpu.matmul %67, %69, %cst_73 {dimension_numbers = #tpu.dot_dimension_numbers<[1], [0], [0], [1], [0, 0, 1, 1], [], []>} : vector<20x128xf32>, vector<128x128xf32>, vector<20x128xf32> -> vector<20x128xf32>
    %c2_74 = arith.constant 2 : index
    %c0_75 = arith.constant 0 : index
    %71 = vector.load %arg13[%c2_74, %c0_75] : memref<22x128xf32, #tpu.memory_space<vmem>>, vector<20x128xf32>
    %c1_76 = arith.constant 1 : index
    %c0_77 = arith.constant 0 : index
    %c0_78 = arith.constant 0 : index
    %72 = vector.load %arg9[%c1_76, %c0_77, %c0_78] : memref<2x128x128xf32, #tpu.memory_space<vmem>>, vector<1x128x128xf32>
    %73 = vector.shape_cast %72 : vector<1x128x128xf32> to vector<128x128xf32>
    %cst_79 = arith.constant dense<0.000000e+00> : vector<20x128xf32>
    %74 = tpu.matmul %71, %73, %cst_79 {dimension_numbers = #tpu.dot_dimension_numbers<[1], [0], [0], [1], [0, 0, 1, 1], [], []>} : vector<20x128xf32>, vector<128x128xf32>, vector<20x128xf32> -> vector<20x128xf32>
    %75 = arith.addf %70, %74 : vector<20x128xf32>
    %c0_80 = arith.constant 0 : index
    %c0_81 = arith.constant 0 : index
    %76 = vector.load %arg10[%c0_80, %c0_81] : memref<1x128xf32, #tpu.memory_space<vmem>>, vector<1x128xf32>
    %77 = vector.broadcast %76 : vector<1x128xf32> to vector<20x128xf32>
    %78 = arith.addf %75, %77 : vector<20x128xf32>
    %cst_82 = arith.constant 0.000000e+00 : f32
    %79 = vector.broadcast %cst_82 : f32 to vector<20x128xf32>
    %80 = arith.maximumf %78, %79 : vector<20x128xf32>
    %81 = arith.addf %80, %66 : vector<20x128xf32>
    %cst_83 = arith.constant 0.000000e+00 : f32
    %82 = vector.broadcast %cst_83 : f32 to vector<20x128xf32>
    %83 = arith.maximumf %81, %82 : vector<20x128xf32>
    %84 = vector.broadcast %10 : vector<20x1xf32> to vector<20x128xf32>
    %85 = arith.mulf %83, %84 : vector<20x128xf32>
    %c2_84 = arith.constant 2 : index
    %c0_85 = arith.constant 0 : index
    %86 = vector.load %arg12[%c2_84, %c0_85] : memref<22x128xf32, #tpu.memory_space<vmem>>, vector<20x128xf32>
    tpu.vector_store %arg12[%c2_84, %c0_85], %85 {strides = array<i32>} : memref<22x128xf32, #tpu.memory_space<vmem>>, vector<20x128xf32>,
    %c4_86 = arith.constant 4 : index
    %c0_87 = arith.constant 0 : index
    %87 = vector.load %arg12[%c4_86, %c0_87] : memref<22x128xf32, #tpu.memory_space<vmem>>, vector<8x128xf32>
    %c0_88 = arith.constant 0 : index
    %c0_89 = arith.constant 0 : index
    %c0_90 = arith.constant 0 : index
    %88 = vector.load %arg11[%c0_88, %c0_89, %c0_90] : memref<2x8x128xf32, #tpu.memory_space<vmem>>, vector<1x8x128xf32>
    %89 = vector.shape_cast %88 : vector<1x8x128xf32> to vector<8x128xf32>
    %90 = vector.shape_cast %87 : vector<8x128xf32> to vector<1x8x128xf32>
    tpu.vector_store %arg11[%c0_88, %c0_89, %c0_90], %90 {strides = array<i32>} : memref<2x8x128xf32, #tpu.memory_space<vmem>>, vector<1x8x128xf32>,
    %c14_91 = arith.constant 14 : index
    %c0_92 = arith.constant 0 : index
    %91 = vector.load %arg12[%c14_91, %c0_92] : memref<22x128xf32, #tpu.memory_space<vmem>>, vector<8x128xf32>
    %c1_93 = arith.constant 1 : index
    %c0_94 = arith.constant 0 : index
    %c0_95 = arith.constant 0 : index
    %92 = vector.load %arg11[%c1_93, %c0_94, %c0_95] : memref<2x8x128xf32, #tpu.memory_space<vmem>>, vector<1x8x128xf32>
    %93 = vector.shape_cast %92 : vector<1x8x128xf32> to vector<8x128xf32>
    %94 = vector.shape_cast %91 : vector<8x128xf32> to vector<1x8x128xf32>
    tpu.vector_store %arg11[%c1_93, %c0_94, %c0_95], %94 {strides = array<i32>} : memref<2x8x128xf32, #tpu.memory_space<vmem>>, vector<1x8x128xf32>,
    return
  }
  func.func @transform_0(%arg0: i32) -> (i32, i32, i32) {
    %c0_i32 = arith.constant 0 : i32
    %c0_i32_0 = arith.constant 0 : i32
    %c0_i32_1 = arith.constant 0 : i32
    return %arg0, %c0_i32, %c0_i32_0 : i32, i32, i32
  }
  func.func @transform_1(%arg0: i32) -> (i32, i32) {
    %c0_i32 = arith.constant 0 : i32
    %c0_i32_0 = arith.constant 0 : i32
    %c0_i32_1 = arith.constant 0 : i32
    return %c0_i32, %c0_i32_0 : i32, i32
  }
  func.func @transform_2(%arg0: i32) -> (i32, i32, i32) {
    %c0_i32 = arith.constant 0 : i32
    %c0_i32_0 = arith.constant 0 : i32
    %c0_i32_1 = arith.constant 0 : i32
    %c0_i32_2 = arith.constant 0 : i32
    return %c0_i32, %c0_i32_0, %c0_i32_1 : i32, i32, i32
  }
  func.func @transform_3(%arg0: i32) -> (i32, i32) {
    %c0_i32 = arith.constant 0 : i32
    %c0_i32_0 = arith.constant 0 : i32
    %c0_i32_1 = arith.constant 0 : i32
    return %c0_i32, %c0_i32_0 : i32, i32
  }
  func.func @transform_4(%arg0: i32) -> (i32, i32, i32) {
    %c0_i32 = arith.constant 0 : i32
    %c0_i32_0 = arith.constant 0 : i32
    %c0_i32_1 = arith.constant 0 : i32
    %c0_i32_2 = arith.constant 0 : i32
    return %c0_i32, %c0_i32_0, %c0_i32_1 : i32, i32, i32
  }
  func.func @transform_5(%arg0: i32) -> (i32, i32) {
    %c0_i32 = arith.constant 0 : i32
    %c0_i32_0 = arith.constant 0 : i32
    %c0_i32_1 = arith.constant 0 : i32
    return %c0_i32, %c0_i32_0 : i32, i32
  }
  func.func @transform_6(%arg0: i32) -> (i32, i32, i32) {
    %c0_i32 = arith.constant 0 : i32
    %c0_i32_0 = arith.constant 0 : i32
    %c0_i32_1 = arith.constant 0 : i32
    %c0_i32_2 = arith.constant 0 : i32
    return %c0_i32, %c0_i32_0, %c0_i32_1 : i32, i32, i32
  }
  func.func @transform_7(%arg0: i32) -> (i32, i32) {
    %c0_i32 = arith.constant 0 : i32
    %c0_i32_0 = arith.constant 0 : i32
    %c0_i32_1 = arith.constant 0 : i32
    return %c0_i32, %c0_i32_0 : i32, i32
  }
  func.func @transform_8(%arg0: i32) -> (i32, i32, i32) {
    %c0_i32 = arith.constant 0 : i32
    %c0_i32_0 = arith.constant 0 : i32
    %c0_i32_1 = arith.constant 0 : i32
    %c0_i32_2 = arith.constant 0 : i32
    return %c0_i32, %c0_i32_0, %c0_i32_1 : i32, i32, i32
  }
  func.func @transform_9(%arg0: i32) -> (i32, i32) {
    %c0_i32 = arith.constant 0 : i32
    %c0_i32_0 = arith.constant 0 : i32
    %c0_i32_1 = arith.constant 0 : i32
    return %c0_i32, %c0_i32_0 : i32, i32
  }
  func.func @transform_10(%arg0: i32) -> (i32, i32, i32) {
    %c0_i32 = arith.constant 0 : i32
    %c0_i32_0 = arith.constant 0 : i32
    %c0_i32_1 = arith.constant 0 : i32
    return %arg0, %c0_i32, %c0_i32_0 : i32, i32, i32
  }
}

</mosaic_0001>

<llo_original>
// kernel: temporal_conv_net_2d.1
$region0: #{temporal_conv_net_2d.1}
  #allocation0 [shape = 'u32[]', space=smem, size = 0x4, offset = 0x4, fixed_abs, tag = 'smem constant byte address 0x4 - core index']
  #allocation1 [shape = 'u32[144,128]{1,0:T(1,128)}', space=vmem, size = 0x12000, scoped, tag = 'internal scratch']
  #allocation2 [shape = 'f32[22,128]{1,0:T(8,128)}', space=vmem, size = 0x3000, scoped, tag = 'scratch operand']
  #allocation3 [shape = 'f32[22,128]{1,0:T(8,128)}', space=vmem, size = 0x3000, scoped, tag = 'scratch operand']
  %s0 = inlined_call_operand.vmem [shape: f32[2,8,128], index: 0, kind: input, shape index: {}]
  %s1 = inlined_call_operand.vmem [shape: f32[20,1], index: 1, kind: input, shape index: {}]
  %s2 = inlined_call_operand.vmem [shape: f32[2,128,128], index: 2, kind: input, shape index: {}]
  %s3 = inlined_call_operand.vmem [shape: f32[1,128], index: 3, kind: input, shape index: {}]
  %s4 = inlined_call_operand.hbm [shape: f32[2,128,128], index: 4, kind: input, shape index: {}]
  %s5 = inlined_call_operand.vmem [shape: f32[1,128], index: 5, kind: input, shape index: {}]
  %s6 = inlined_call_operand.hbm [shape: f32[2,128,128], index: 6, kind: input, shape index: {}]
  %s7 = inlined_call_operand.vmem [shape: f32[1,128], index: 7, kind: input, shape index: {}]
  %s8 = inlined_call_operand.hbm [shape: f32[2,128,128], index: 8, kind: input, shape index: {}]
  %s9 = inlined_call_operand.vmem [shape: f32[1,128], index: 9, kind: input, shape index: {}]
  %s10 = inlined_call_operand.vmem [shape: f32[2,8,128], index: 10, kind: output, shape index: {}]
  %s11 = sld [smem:[#allocation0]]
  $region62: #{temporal_conv_net_2d.1} parent=0
    _
  %s13 = ssub.s32 1, %s11
  %s14 = scalar_select 0, %s13, %s11
  $region1: #{temporal_conv_net_2d.1} parent=0
    #allocation4 [shape = 'u8[131072]{0}', space=vmem, size = 0x20000, scoped, tag = 'input window, operand 4, single buffered']
    #allocation5 [shape = 's32[1]{0}', space=sflag, size = 0x4, scoped, tag = 'scoped memory for temporal_conv_net_2d.1']
    #allocation6 [shape = 'u8[131072]{0}', space=vmem, size = 0x20000, scoped, tag = 'input window, operand 6, single buffered']
    #allocation7 [shape = 's32[1]{0}', space=sflag, size = 0x4, scoped, tag = 'scoped memory for temporal_conv_net_2d.1']
    #allocation8 [shape = 'u8[131072]{0}', space=vmem, size = 0x20000, scoped, tag = 'input window, operand 8, single buffered']
    %15 = vsyncpa [#allocation5], 0
    %16 = vsyncpa [#allocation7], 0
    // Predicated region
    $region2: #{temporal_conv_net_2d.1} parent=1 // pred_check
      _
    $region3: #{temporal_conv_net_2d.1} parent=1 // pred_check_branch
      %18 = sbr.rel (0) target = $region5
    $region4: #{temporal_conv_net_2d.1} parent=1 // pred_region
      _
    $region5: #{temporal_conv_net_2d.1} parent=1 // pred_fallthru
      _
    // Predicated region
    $region6: #{temporal_conv_net_2d.1} parent=1 // pred_check
      _
    $region7: #{temporal_conv_net_2d.1} parent=1 // pred_check_branch
      %20 = sbr.rel (0) target = $region9
    $region8: #{temporal_conv_net_2d.1} parent=1 // pred_region
      _
    $region9: #{temporal_conv_net_2d.1} parent=1 // pred_fallthru
      _
    // Predicated region
    $region10: #{temporal_conv_net_2d.1} parent=1 // pred_check
      _
    $region11: #{temporal_conv_net_2d.1} parent=1 // pred_check_branch
      %22 = sbr.rel (0) target = $region13
    $region12: #{temporal_conv_net_2d.1} parent=1 // pred_region
      _
    $region13: #{temporal_conv_net_2d.1} parent=1 // pred_fallthru
      _
    // Predicated region
    $region14: #{temporal_conv_net_2d.1} parent=1 // pred_check
      _
    $region15: #{temporal_conv_net_2d.1} parent=1 // pred_check_branch
      %24 = sbr.rel (0) target = $region17
    $region16: #{temporal_conv_net_2d.1} parent=1 // pred_region
      _
    $region17: #{temporal_conv_net_2d.1} parent=1 // pred_fallthru
      _
    // Predicated region
    $region18: #{temporal_conv_net_2d.1} parent=1 // pred_check
      _
    $region19: #{temporal_conv_net_2d.1} parent=1 // pred_check_branch
      %26 = sbr.rel (0) target = $region21
    $region20: #{temporal_conv_net_2d.1} parent=1 // pred_region
      %s28 = ssub.s32 4096, 4096
      %29 = vsyncadd [#allocation5], %s28
      %s30 = sshll.u32 [#allocation4], 4
      %s31 = int_to_ptr.vmem [resolvable:$true] %s30
      %36 = dma.hbm_to_vmem [thread:$0]  %s4, 4096, %s31, [#allocation5], 128, 128, 8
    $region21: #{temporal_conv_net_2d.1} parent=1 // pred_fallthru
      _
    // Predicated region
    $region22: #{temporal_conv_net_2d.1} parent=1 // pred_check
      _
    $region23: #{temporal_conv_net_2d.1} parent=1 // pred_check_branch
      %38 = sbr.rel (0) target = $region25
    $region24: #{temporal_conv_net_2d.1} parent=1 // pred_region
      _
    $region25: #{temporal_conv_net_2d.1} parent=1 // pred_fallthru
      _
    // Predicated region
    $region26: #{temporal_conv_net_2d.1} parent=1 // pred_check
      _
    $region27: #{temporal_conv_net_2d.1} parent=1 // pred_check_branch
      %40 = sbr.rel (0) target = $region29
    $region28: #{temporal_conv_net_2d.1} parent=1 // pred_region
      %s42 = ssub.s32 4096, 4096
      %43 = vsyncadd [#allocation7], %s42
      %s44 = sshll.u32 [#allocation6], 4
      %s45 = int_to_ptr.vmem [resolvable:$true] %s44
      %50 = dma.hbm_to_vmem [thread:$0]  %s6, 4096, %s45, [#allocation7], 128, 128, 8
    $region29: #{temporal_conv_net_2d.1} parent=1 // pred_fallthru
      _
    // Predicated region
    $region30: #{temporal_conv_net_2d.1} parent=1 // pred_check
      _
    $region31: #{temporal_conv_net_2d.1} parent=1 // pred_check_branch
      %52 = sbr.rel (0) target = $region33
    $region32: #{temporal_conv_net_2d.1} parent=1 // pred_region
      _
    $region33: #{temporal_conv_net_2d.1} parent=1 // pred_fallthru
      _
    // Predicated region
    $region34: #{temporal_conv_net_2d.1} parent=1 // pred_check
      _
    $region35: #{temporal_conv_net_2d.1} parent=1 // pred_check_branch
      %54 = sbr.rel (0) target = $region37
    $region36: #{temporal_conv_net_2d.1} parent=1 // pred_region
      %s56 = ssub.s32 4096, 4096
      %57 = vsyncadd [#allocation7], %s56
      %s58 = sshll.u32 [#allocation8], 4
      %s59 = int_to_ptr.vmem [resolvable:$true] %s58
      %64 = dma.hbm_to_vmem [thread:$0]  %s8, 4096, %s59, [#allocation7], 128, 128, 8
    $region37: #{temporal_conv_net_2d.1} parent=1 // pred_fallthru
      _
    // Predicated region
    $region38: #{temporal_conv_net_2d.1} parent=1 // pred_check
      _
    $region39: #{temporal_conv_net_2d.1} parent=1 // pred_check_branch
      %66 = sbr.rel (0) target = $region41
    $region40: #{temporal_conv_net_2d.1} parent=1 // pred_region
      _
    $region41: #{temporal_conv_net_2d.1} parent=1 // pred_fallthru
      _
    // Predicated region
    $region42: #{temporal_conv_net_2d.1} parent=1 // pred_check
      _
    $region43: #{temporal_conv_net_2d.1} parent=1 // pred_check_branch
      %68 = sbr.rel (0) target = $region45
    $region44: #{temporal_conv_net_2d.1} parent=1 // pred_region
      %69 = dma.done [#allocation5], 4096
    $region45: #{temporal_conv_net_2d.1} parent=1 // pred_fallthru
      _
    // Predicated region
    $region46: #{temporal_conv_net_2d.1} parent=1 // pred_check
      _
    $region47: #{temporal_conv_net_2d.1} parent=1 // pred_check_branch
      %71 = sbr.rel (0) target = $region49
    $region48: #{temporal_conv_net_2d.1} parent=1 // pred_region
      %72 = dma.done [#allocation7], 4096
    $region49: #{temporal_conv_net_2d.1} parent=1 // pred_fallthru
      _
    // Predicated region
    $region50: #{temporal_conv_net_2d.1} parent=1 // pred_check
      _
    $region51: #{temporal_conv_net_2d.1} parent=1 // pred_check_branch
      %74 = sbr.rel (0) target = $region53
    $region52: #{temporal_conv_net_2d.1} parent=1 // pred_region
      %75 = dma.done [#allocation7], 4096
    $region53: #{temporal_conv_net_2d.1} parent=1 // pred_fallthru
      _
    %76 = vst [vmem:[#allocation2] sm:$0xff] 0.0
    %77 = vst [vmem:[#allocation2 + $0x8] sm:$0xff] 0.0
    %78 = vst [vmem:[#allocation2 + $0x10] sm:$0x3f] 0.0
    %79 = vst [vmem:[#allocation3] sm:$0xff] 0.0
    %80 = vst [vmem:[#allocation3 + $0x8] sm:$0xff] 0.0
    %81 = vst [vmem:[#allocation3 + $0x10] sm:$0x3f] 0.0
    %v82 = vld [vmem:[%s0] sm:$0xff]
    %83 = vst [vmem:[#allocation2 + $0x4] sm:$0xff] %v82
    %s84 = scalar_lea.vmem %s0, 8
    %v85 = vld [vmem:[%s84] sm:$0xff]
    %86 = vst [vmem:[#allocation2 + $0xe] sm:$0xff] %v85
    %v87 = vld [vmem:[%s1] sm:$0xff]
    %v88 = vld [vmem:[%s1 + $0x8] sm:$0xff]
    %v89 = vld [vmem:[%s1 + $0x10] sm:$0xf]
    %v90 = vld [vmem:[#allocation2 + $0x1] sm:$0xff]
    %v91 = vld [vmem:[#allocation2 + $0x9] sm:$0xff]
    %v92 = vld [vmem:[#allocation2 + $0x11] sm:$0xf]
    %v93 = vld [vmem:[%s2] sm:$0xff]
    %v94 = vld [vmem:[%s2 + $0x8] sm:$0xff]
    %v95 = vld [vmem:[%s2 + $0x10] sm:$0xff]
    %v96 = vld [vmem:[%s2 + $0x18] sm:$0xff]
    %v97 = vld [vmem:[%s2 + $0x20] sm:$0xff]
    %v98 = vld [vmem:[%s2 + $0x28] sm:$0xff]
    %v99 = vld [vmem:[%s2 + $0x30] sm:$0xff]
    %v100 = vld [vmem:[%s2 + $0x38] sm:$0xff]
    %v101 = vld [vmem:[%s2 + $0x40] sm:$0xff]
    %v102 = vld [vmem:[%s2 + $0x48] sm:$0xff]
    %v103 = vld [vmem:[%s2 + $0x50] sm:$0xff]
    %v104 = vld [vmem:[%s2 + $0x58] sm:$0xff]
    %v105 = vld [vmem:[%s2 + $0x60] sm:$0xff]
    %v106 = vld [vmem:[%s2 + $0x68] sm:$0xff]
    %v107 = vld [vmem:[%s2 + $0x70] sm:$0xff]
    %v108 = vld [vmem:[%s2 + $0x78] sm:$0xff]
    %v109 = vld [vmem:[#allocation2 + $0x2] sm:$0xff]
    %v110 = vld [vmem:[#allocation2 + $0xa] sm:$0xff]
    %v111 = vld [vmem:[#allocation2 + $0x12] sm:$0xf]
    %s112 = scalar_lea.vmem %s2, 128
    %v113 = vld [vmem:[%s112] sm:$0xff]
    %v114 = vld [vmem:[%s112 + $0x8] sm:$0xff]
    %v115 = vld [vmem:[%s112 + $0x10] sm:$0xff]
    %v116 = vld [vmem:[%s112 + $0x18] sm:$0xff]
    %v117 = vld [vmem:[%s112 + $0x20] sm:$0xff]
    %v118 = vld [vmem:[%s112 + $0x28] sm:$0xff]
    %v119 = vld [vmem:[%s112 + $0x30] sm:$0xff]
    %v120 = vld [vmem:[%s112 + $0x38] sm:$0xff]
    %v121 = vld [vmem:[%s112 + $0x40] sm:$0xff]
    %v122 = vld [vmem:[%s112 + $0x48] sm:$0xff]
    %v123 = vld [vmem:[%s112 + $0x50] sm:$0xff]
    %v124 = vld [vmem:[%s112 + $0x58] sm:$0xff]
    %v125 = vld [vmem:[%s112 + $0x60] sm:$0xff]
    %v126 = vld [vmem:[%s112 + $0x68] sm:$0xff]
    %v127 = vld [vmem:[%s112 + $0x70] sm:$0xff]
    %v128 = vld [vmem:[%s112 + $0x78] sm:$0xff]
    %129 = vmatprep.subr.mxu0 0.0
    %130 = vmatpush1.msra.mxu0 %v113
    %131 = vmatprep.subr.mxu0 0.0
    %132 = vmatpush1.msra.mxu0 %v114
    %133 = vmatprep.subr.mxu0 0.0
    %134 = vmatpush1.msra.mxu0 %v115
    %135 = vmatprep.subr.mxu0 0.0
    %136 = vmatpush1.msra.mxu0 %v116
    %137 = vmatprep.subr.mxu0 0.0
    %138 = vmatpush1.msra.mxu0 %v117
    %139 = vmatprep.subr.mxu0 0.0
    %140 = vmatpush1.msra.mxu0 %v118
    %141 = vmatprep.subr.mxu0 0.0
    %142 = vmatpush1.msra.mxu0 %v119
    %143 = vmatprep.subr.mxu0 0.0
    %144 = vmatpush1.msra.mxu0 %v120
    %145 = vmatprep.subr.mxu0 0.0
    %146 = vmatpush1.msra.mxu0 %v121
    %147 = vmatprep.subr.mxu0 0.0
    %148 = vmatpush1.msra.mxu0 %v122
    %149 = vmatprep.subr.mxu0 0.0
    %150 = vmatpush1.msra.mxu0 %v123
    %151 = vmatprep.subr.mxu0 0.0
    %152 = vmatpush1.msra.mxu0 %v124
    %153 = vmatprep.subr.mxu0 0.0
    %154 = vmatpush1.msra.mxu0 %v125
    %155 = vmatprep.subr.mxu0 0.0
    %156 = vmatpush1.msra.mxu0 %v126
    %157 = vmatprep.subr.mxu0 0.0
    %158 = vmatpush1.msra.mxu0 %v127
    %159 = vmatprep.subr.mxu0 0.0
    %160 = vmatpush1.msra.mxu0 %v128
    %161 = vmatprep.subr.mxu0 0.0
    %162 = vmatpush1.msra.mxu0 0.0
    %163 = vmatprep.subr.mxu0 0.0
    %164 = vmatpush1.msra.mxu0 0.0
    %165 = vmatprep.subr.mxu0 0.0
    %166 = vmatpush1.msra.mxu0 0.0
    %167 = vmatprep.subr.mxu0 0.0
    %168 = vmatpush1.msra.mxu0 0.0
    %169 = vmatprep.subr.mxu0 0.0
    %170 = vmatpush1.msra.mxu0 0.0
    %171 = vmatprep.subr.mxu0 0.0
    %172 = vmatpush1.msra.mxu0 0.0
    %173 = vmatprep.subr.mxu0 0.0
    %174 = vmatpush1.msra.mxu0 0.0
    %175 = vmatprep.subr.mxu0 0.0
    %176 = vmatpush1.msra.mxu0 0.0
    %177 = vmatprep.subr.mxu0 0.0
    %178 = vmatpush1.msra.mxu0 0.0
    %179 = vmatprep.subr.mxu0 0.0
    %180 = vmatpush1.msra.mxu0 0.0
    %181 = vmatprep.subr.mxu0 0.0
    %182 = vmatpush1.msra.mxu0 0.0
    %183 = vmatprep.subr.mxu0 0.0
    %184 = vmatpush1.msra.mxu0 0.0
    %185 = vmatprep.subr.mxu0 0.0
    %186 = vmatpush1.msra.mxu0 0.0
    %187 = vmatprep.subr.mxu0 0.0
    %188 = vmatpush1.msra.mxu0 0.0
    %189 = vmatprep.subr.mxu0 0.0
    %190 = vmatpush1.msra.mxu0 0.0
    %191 = vmatprep.subr.mxu0 0.0
    %192 = vmatpush1.msra.mxu0 0.0
    %193 = vmatprep.mubr.f32.mxu0 0.0
    %194 = vmatmul.mubr.f32.gmra.mrb[0].mxu0 %v109
    %v195 = vpop.f32.mrb[0].mxu0
    %v196 = vadd.f32 0.0, %v195
    %v197 = vpop.f32.mrb[0].mxu0
    %198 = vmatprep.mubr.f32.mxu0 0.0
    %199 = vmatmul.mubr.f32.gmra.mrb[0].mxu0 %v110
    %v200 = vpop.f32.mrb[0].mxu0
    %v201 = vadd.f32 0.0, %v200
    %v202 = vpop.f32.mrb[0].mxu0
    %203 = vmatprep.mubr.f32.mxu0 0.0
    %204 = vmatmul.mubr.f32.gmra.mrb[0].mxu0 %v111
    %v205 = vpop.f32.mrb[0].mxu0
    %v206 = vadd.f32 0.0, %v205
    %v207 = vpop.f32.mrb[0].mxu0
    %208 = vdwg.mxu0
    %209 = vmatprep.subr.mxu0 0.0
    %210 = vmatpush1.msra.mxu0 %v93
    %211 = vmatprep.subr.mxu0 0.0
    %212 = vmatpush1.msra.mxu0 %v94
    %213 = vmatprep.subr.mxu0 0.0
    %214 = vmatpush1.msra.mxu0 %v95
    %215 = vmatprep.subr.mxu0 0.0
    %216 = vmatpush1.msra.mxu0 %v96
    %217 = vmatprep.subr.mxu0 0.0
    %218 = vmatpush1.msra.mxu0 %v97
    %219 = vmatprep.subr.mxu0 0.0
    %220 = vmatpush1.msra.mxu0 %v98
    %221 = vmatprep.subr.mxu0 0.0
    %222 = vmatpush1.msra.mxu0 %v99
    %223 = vmatprep.subr.mxu0 0.0
    %224 = vmatpush1.msra.mxu0 %v100
    %225 = vmatprep.subr.mxu0 0.0
    %226 = vmatpush1.msra.mxu0 %v101
    %227 = vmatprep.subr.mxu0 0.0
    %228 = vmatpush1.msra.mxu0 %v102
    %229 = vmatprep.subr.mxu0 0.0
    %230 = vmatpush1.msra.mxu0 %v103
    %231 = vmatprep.subr.mxu0 0.0
    %232 = vmatpush1.msra.mxu0 %v104
    %233 = vmatprep.subr.mxu0 0.0
    %234 = vmatpush1.msra.mxu0 %v105
    %235 = vmatprep.subr.mxu0 0.0
    %236 = vmatpush1.msra.mxu0 %v106
    %237 = vmatprep.subr.mxu0 0.0
    %238 = vmatpush1.msra.mxu0 %v107
    %239 = vmatprep.subr.mxu0 0.0
    %240 = vmatpush1.msra.mxu0 %v108
    %241 = vmatprep.subr.mxu0 0.0
    %242 = vmatpush1.msra.mxu0 0.0
    %243 = vmatprep.subr.mxu0 0.0
    %244 = vmatpush1.msra.mxu0 0.0
    %245 = vmatprep.subr.mxu0 0.0
    %246 = vmatpush1.msra.mxu0 0.0
    %247 = vmatprep.subr.mxu0 0.0
    %248 = vmatpush1.msra.mxu0 0.0
    %249 = vmatprep.subr.mxu0 0.0
    %250 = vmatpush1.msra.mxu0 0.0
    %251 = vmatprep.subr.mxu0 0.0
    %252 = vmatpush1.msra.mxu0 0.0
    %253 = vmatprep.subr.mxu0 0.0
    %254 = vmatpush1.msra.mxu0 0.0
    %255 = vmatprep.subr.mxu0 0.0
    %256 = vmatpush1.msra.mxu0 0.0
    %257 = vmatprep.subr.mxu0 0.0
    %258 = vmatpush1.msra.mxu0 0.0
    %259 = vmatprep.subr.mxu0 0.0
    %260 = vmatpush1.msra.mxu0 0.0
    %261 = vmatprep.subr.mxu0 0.0
    %262 = vmatpush1.msra.mxu0 0.0
    %263 = vmatprep.subr.mxu0 0.0
    %264 = vmatpush1.msra.mxu0 0.0
    %265 = vmatprep.subr.mxu0 0.0
    %266 = vmatpush1.msra.mxu0 0.0
    %267 = vmatprep.subr.mxu0 0.0
    %268 = vmatpush1.msra.mxu0 0.0
    %269 = vmatprep.subr.mxu0 0.0
    %270 = vmatpush1.msra.mxu0 0.0
    %271 = vmatprep.subr.mxu0 0.0
    %272 = vmatpush1.msra.mxu0 0.0
    %273 = vmatprep.mubr.f32.mxu0 0.0
    %274 = vmatmul.mubr.f32.gmra.mrb[0].mxu0 %v90
    %v275 = vpop.f32.mrb[0].mxu0
    %v276 = vadd.f32 %v196, %v275
    %v277 = vpop.f32.mrb[0].mxu0
    %278 = vmatprep.mubr.f32.mxu0 0.0
    %279 = vmatmul.mubr.f32.gmra.mrb[0].mxu0 %v91
    %v280 = vpop.f32.mrb[0].mxu0
    %v281 = vadd.f32 %v201, %v280
    %v282 = vpop.f32.mrb[0].mxu0
    %283 = vmatprep.mubr.f32.mxu0 0.0
    %284 = vmatmul.mubr.f32.gmra.mrb[0].mxu0 %v92
    %v285 = vpop.f32.mrb[0].mxu0
    %v286 = vadd.f32 %v206, %v285
    %v287 = vpop.f32.mrb[0].mxu0
    %288 = vdwg.mxu0
    %v289 = vld [vmem:[%s3] sm:$0x1]
    %v291 = vlaneseq
    %v292 = vshrl.u32 %v291, 7
    %v293 = vsub.s32 0, %v292
    %v294 = vrot.slane %v289, %v293
    %v296 = vadd.f32 %v276, %v294
    %v297 = vadd.f32 %v281, %v294
    %v298 = vadd.f32 %v286, %v294
    %v299 = vmax.f32 %v296, 0.0
    %v300 = vmax.f32 %v297, 0.0
    %v301 = vmax.f32 %v298, 0.0
    %303 = vset.pattern.permute.xlu0 0
    %304 = vperm.xlu0 %303, %v87
    %v305 = vpop.permute.xlu0 %304
    %308 = vset.pattern.permute.xlu0 0
    %309 = vperm.xlu0 %308, %v88
    %v310 = vpop.permute.xlu0 %309
    %313 = vset.pattern.permute.xlu0 0
    %314 = vperm.xlu0 %313, %v89
    %v315 = vpop.permute.xlu0 %314
    %v317 = vmul.f32 %v299, %v305
    %v318 = vmul.f32 %v300, %v310
    %v319 = vmul.f32 %v301, %v315
    %320 = vst [vmem:[#allocation3 + $0x2] sm:$0xff] %v317
    %321 = vst [vmem:[#allocation3 + $0xa] sm:$0xff] %v318
    %322 = vst [vmem:[#allocation3 + $0x12] sm:$0xf] %v319
    %v323 = vld [vmem:[#allocation2 + $0x2] sm:$0xff]
    %v324 = vld [vmem:[#allocation2 + $0xa] sm:$0xff]
    %v325 = vld [vmem:[#allocation2 + $0x12] sm:$0xf]
    %v326 = vld [vmem:[#allocation3 + $0x1] sm:$0xff]
    %v327 = vld [vmem:[#allocation3 + $0x9] sm:$0xff]
    %v328 = vld [vmem:[#allocation3 + $0x11] sm:$0xf]
    %v329 = vld [vmem:[#allocation4] sm:$0xff]
    %v330 = vld [vmem:[#allocation4 + $0x8] sm:$0xff]
    %v331 = vld [vmem:[#allocation4 + $0x10] sm:$0xff]
    %v332 = vld [vmem:[#allocation4 + $0x18] sm:$0xff]
    %v333 = vld [vmem:[#allocation4 + $0x20] sm:$0xff]
    %v334 = vld [vmem:[#allocation4 + $0x28] sm:$0xff]
    %v335 = vld [vmem:[#allocation4 + $0x30] sm:$0xff]
    %v336 = vld [vmem:[#allocation4 + $0x38] sm:$0xff]
    %v337 = vld [vmem:[#allocation4 + $0x40] sm:$0xff]
    %v338 = vld [vmem:[#allocation4 + $0x48] sm:$0xff]
    %v339 = vld [vmem:[#allocation4 + $0x50] sm:$0xff]
    %v340 = vld [vmem:[#allocation4 + $0x58] sm:$0xff]
    %v341 = vld [vmem:[#allocation4 + $0x60] sm:$0xff]
    %v342 = vld [vmem:[#allocation4 + $0x68] sm:$0xff]
    %v343 = vld [vmem:[#allocation4 + $0x70] sm:$0xff]
    %v344 = vld [vmem:[#allocation4 + $0x78] sm:$0xff]
    %v345 = vld [vmem:[#allocation3 + $0x2] sm:$0xff]
    %v346 = vld [vmem:[#allocation3 + $0xa] sm:$0xff]
    %v347 = vld [vmem:[#allocation3 + $0x12] sm:$0xf]
    %s348 = scalar_lea.vmem [#allocation4], 128
    %v349 = vld [vmem:[%s348] sm:$0xff]
    %v350 = vld [vmem:[%s348 + $0x8] sm:$0xff]
    %v351 = vld [vmem:[%s348 + $0x10] sm:$0xff]
    %v352 = vld [vmem:[%s348 + $0x18] sm:$0xff]
    %v353 = vld [vmem:[%s348 + $0x20] sm:$0xff]
    %v354 = vld [vmem:[%s348 + $0x28] sm:$0xff]
    %v355 = vld [vmem:[%s348 + $0x30] sm:$0xff]
    %v356 = vld [vmem:[%s348 + $0x38] sm:$0xff]
    %v357 = vld [vmem:[%s348 + $0x40] sm:$0xff]
    %v358 = vld [vmem:[%s348 + $0x48] sm:$0xff]
    %v359 = vld [vmem:[%s348 + $0x50] sm:$0xff]
    %v360 = vld [vmem:[%s348 + $0x58] sm:$0xff]
    %v361 = vld [vmem:[%s348 + $0x60] sm:$0xff]
    %v362 = vld [vmem:[%s348 + $0x68] sm:$0xff]
    %v363 = vld [vmem:[%s348 + $0x70] sm:$0xff]
    %v364 = vld [vmem:[%s348 + $0x78] sm:$0xff]
    %365 = vmatprep.subr.mxu0 0.0
    %366 = vmatpush1.msra.mxu0 %v349
    %367 = vmatprep.subr.mxu0 0.0
    %368 = vmatpush1.msra.mxu0 %v350
    %369 = vmatprep.subr.mxu0 0.0
    %370 = vmatpush1.msra.mxu0 %v351
    %371 = vmatprep.subr.mxu0 0.0
    %372 = vmatpush1.msra.mxu0 %v352
    %373 = vmatprep.subr.mxu0 0.0
    %374 = vmatpush1.msra.mxu0 %v353
    %375 = vmatprep.subr.mxu0 0.0
    %376 = vmatpush1.msra.mxu0 %v354
    %377 = vmatprep.subr.mxu0 0.0
    %378 = vmatpush1.msra.mxu0 %v355
    %379 = vmatprep.subr.mxu0 0.0
    %380 = vmatpush1.msra.mxu0 %v356
    %381 = vmatprep.subr.mxu0 0.0
    %382 = vmatpush1.msra.mxu0 %v357
    %383 = vmatprep.subr.mxu0 0.0
    %384 = vmatpush1.msra.mxu0 %v358
    %385 = vmatprep.subr.mxu0 0.0
    %386 = vmatpush1.msra.mxu0 %v359
    %387 = vmatprep.subr.mxu0 0.0
    %388 = vmatpush1.msra.mxu0 %v360
    %389 = vmatprep.subr.mxu0 0.0
    %390 = vmatpush1.msra.mxu0 %v361
    %391 = vmatprep.subr.mxu0 0.0
    %392 = vmatpush1.msra.mxu0 %v362
    %393 = vmatprep.subr.mxu0 0.0
    %394 = vmatpush1.msra.mxu0 %v363
    %395 = vmatprep.subr.mxu0 0.0
    %396 = vmatpush1.msra.mxu0 %v364
    %397 = vmatprep.subr.mxu0 0.0
    %398 = vmatpush1.msra.mxu0 0.0
    %399 = vmatprep.subr.mxu0 0.0
    %400 = vmatpush1.msra.mxu0 0.0
    %401 = vmatprep.subr.mxu0 0.0
    %402 = vmatpush1.msra.mxu0 0.0
    %403 = vmatprep.subr.mxu0 0.0
    %404 = vmatpush1.msra.mxu0 0.0
    %405 = vmatprep.subr.mxu0 0.0
    %406 = vmatpush1.msra.mxu0 0.0
    %407 = vmatprep.subr.mxu0 0.0
    %408 = vmatpush1.msra.mxu0 0.0
    %409 = vmatprep.subr.mxu0 0.0
    %410 = vmatpush1.msra.mxu0 0.0
    %411 = vmatprep.subr.mxu0 0.0
    %412 = vmatpush1.msra.mxu0 0.0
    %413 = vmatprep.subr.mxu0 0.0
    %414 = vmatpush1.msra.mxu0 0.0
    %415 = vmatprep.subr.mxu0 0.0
    %416 = vmatpush1.msra.mxu0 0.0
    %417 = vmatprep.subr.mxu0 0.0
    %418 = vmatpush1.msra.mxu0 0.0
    %419 = vmatprep.subr.mxu0 0.0
    %420 = vmatpush1.msra.mxu0 0.0
    %421 = vmatprep.subr.mxu0 0.0
    %422 = vmatpush1.msra.mxu0 0.0
    %423 = vmatprep.subr.mxu0 0.0
    %424 = vmatpush1.msra.mxu0 0.0
    %425 = vmatprep.subr.mxu0 0.0
    %426 = vmatpush1.msra.mxu0 0.0
    %427 = vmatprep.subr.mxu0 0.0
    %428 = vmatpush1.msra.mxu0 0.0
    %429 = vmatprep.mubr.f32.mxu0 0.0
    %430 = vmatmul.mubr.f32.gmra.mrb[0].mxu0 %v345
    %v431 = vpop.f32.mrb[0].mxu0
    %v432 = vadd.f32 0.0, %v431
    %v433 = vpop.f32.mrb[0].mxu0
    %434 = vmatprep.mubr.f32.mxu0 0.0
    %435 = vmatmul.mubr.f32.gmra.mrb[0].mxu0 %v346
    %v436 = vpop.f32.mrb[0].mxu0
    %v437 = vadd.f32 0.0, %v436
    %v438 = vpop.f32.mrb[0].mxu0
    %439 = vmatprep.mubr.f32.mxu0 0.0
    %440 = vmatmul.mubr.f32.gmra.mrb[0].mxu0 %v347
    %v441 = vpop.f32.mrb[0].mxu0
    %v442 = vadd.f32 0.0, %v441
    %v443 = vpop.f32.mrb[0].mxu0
    %444 = vdwg.mxu0
    %445 = vmatprep.subr.mxu0 0.0
    %446 = vmatpush1.msra.mxu0 %v329
    %447 = vmatprep.subr.mxu0 0.0
    %448 = vmatpush1.msra.mxu0 %v330
    %449 = vmatprep.subr.mxu0 0.0
    %450 = vmatpush1.msra.mxu0 %v331
    %451 = vmatprep.subr.mxu0 0.0
    %452 = vmatpush1.msra.mxu0 %v332
    %453 = vmatprep.subr.mxu0 0.0
    %454 = vmatpush1.msra.mxu0 %v333
    %455 = vmatprep.subr.mxu0 0.0
    %456 = vmatpush1.msra.mxu0 %v334
    %457 = vmatprep.subr.mxu0 0.0
    %458 = vmatpush1.msra.mxu0 %v335
    %459 = vmatprep.subr.mxu0 0.0
    %460 = vmatpush1.msra.mxu0 %v336
    %461 = vmatprep.subr.mxu0 0.0
    %462 = vmatpush1.msra.mxu0 %v337
    %463 = vmatprep.subr.mxu0 0.0
    %464 = vmatpush1.msra.mxu0 %v338
    %465 = vmatprep.subr.mxu0 0.0
    %466 = vmatpush1.msra.mxu0 %v339
    %467 = vmatprep.subr.mxu0 0.0
    %468 = vmatpush1.msra.mxu0 %v340
    %469 = vmatprep.subr.mxu0 0.0
    %470 = vmatpush1.msra.mxu0 %v341
    %471 = vmatprep.subr.mxu0 0.0
    %472 = vmatpush1.msra.mxu0 %v342
    %473 = vmatprep.subr.mxu0 0.0
    %474 = vmatpush1.msra.mxu0 %v343
    %475 = vmatprep.subr.mxu0 0.0
    %476 = vmatpush1.msra.mxu0 %v344
    %477 = vmatprep.subr.mxu0 0.0
    %478 = vmatpush1.msra.mxu0 0.0
    %479 = vmatprep.subr.mxu0 0.0
    %480 = vmatpush1.msra.mxu0 0.0
    %481 = vmatprep.subr.mxu0 0.0
    %482 = vmatpush1.msra.mxu0 0.0
    %483 = vmatprep.subr.mxu0 0.0
    %484 = vmatpush1.msra.mxu0 0.0
    %485 = vmatprep.subr.mxu0 0.0
    %486 = vmatpush1.msra.mxu0 0.0
    %487 = vmatprep.subr.mxu0 0.0
    %488 = vmatpush1.msra.mxu0 0.0
    %489 = vmatprep.subr.mxu0 0.0
    %490 = vmatpush1.msra.mxu0 0.0
    %491 = vmatprep.subr.mxu0 0.0
    %492 = vmatpush1.msra.mxu0 0.0
    %493 = vmatprep.subr.mxu0 0.0
    %494 = vmatpush1.msra.mxu0 0.0
    %495 = vmatprep.subr.mxu0 0.0
    %496 = vmatpush1.msra.mxu0 0.0
    %497 = vmatprep.subr.mxu0 0.0
    %498 = vmatpush1.msra.mxu0 0.0
    %499 = vmatprep.subr.mxu0 0.0
    %500 = vmatpush1.msra.mxu0 0.0
    %501 = vmatprep.subr.mxu0 0.0
    %502 = vmatpush1.msra.mxu0 0.0
    %503 = vmatprep.subr.mxu0 0.0
    %504 = vmatpush1.msra.mxu0 0.0
    %505 = vmatprep.subr.mxu0 0.0
    %506 = vmatpush1.msra.mxu0 0.0
    %507 = vmatprep.subr.mxu0 0.0
    %508 = vmatpush1.msra.mxu0 0.0
    %509 = vmatprep.mubr.f32.mxu0 0.0
    %510 = vmatmul.mubr.f32.gmra.mrb[0].mxu0 %v326
    %v511 = vpop.f32.mrb[0].mxu0
    %v512 = vadd.f32 %v432, %v511
    %v513 = vpop.f32.mrb[0].mxu0
    %514 = vmatprep.mubr.f32.mxu0 0.0
    %515 = vmatmul.mubr.f32.gmra.mrb[0].mxu0 %v327
    %v516 = vpop.f32.mrb[0].mxu0
    %v517 = vadd.f32 %v437, %v516
    %v518 = vpop.f32.mrb[0].mxu0
    %519 = vmatprep.mubr.f32.mxu0 0.0
    %520 = vmatmul.mubr.f32.gmra.mrb[0].mxu0 %v328
    %v521 = vpop.f32.mrb[0].mxu0
    %v522 = vadd.f32 %v442, %v521
    %v523 = vpop.f32.mrb[0].mxu0
    %524 = vdwg.mxu0
    %v525 = vld [vmem:[%s5] sm:$0x1]
    %v527 = vlaneseq
    %v528 = vshrl.u32 %v527, 7
    %v529 = vsub.s32 0, %v528
    %v530 = vrot.slane %v525, %v529
    %v532 = vadd.f32 %v512, %v530
    %v533 = vadd.f32 %v517, %v530
    %v534 = vadd.f32 %v522, %v530
    %v535 = vmax.f32 %v532, 0.0
    %v536 = vmax.f32 %v533, 0.0
    %v537 = vmax.f32 %v534, 0.0
    %v538 = vadd.f32 %v535, %v323
    %v539 = vadd.f32 %v536, %v324
    %v540 = vadd.f32 %v537, %v325
    %v541 = vmax.f32 %v538, 0.0
    %v542 = vmax.f32 %v539, 0.0
    %v543 = vmax.f32 %v540, 0.0
    %v544 = vmul.f32 %v541, %v305
    %v545 = vmul.f32 %v542, %v310
    %v546 = vmul.f32 %v543, %v315
    %547 = vst [vmem:[#allocation2 + $0x2] sm:$0xff] %v544
    %548 = vst [vmem:[#allocation2 + $0xa] sm:$0xff] %v545
    %549 = vst [vmem:[#allocation2 + $0x12] sm:$0xf] %v546
    %v550 = vld [vmem:[#allocation2] sm:$0xff]
    %v551 = vld [vmem:[#allocation2 + $0x8] sm:$0xff]
    %v552 = vld [vmem:[#allocation2 + $0x10] sm:$0xf]
    %v553 = vld [vmem:[#allocation6] sm:$0xff]
    %v554 = vld [vmem:[#allocation6 + $0x8] sm:$0xff]
    %v555 = vld [vmem:[#allocation6 + $0x10] sm:$0xff]
    %v556 = vld [vmem:[#allocation6 + $0x18] sm:$0xff]
    %v557 = vld [vmem:[#allocation6 + $0x20] sm:$0xff]
    %v558 = vld [vmem:[#allocation6 + $0x28] sm:$0xff]
    %v559 = vld [vmem:[#allocation6 + $0x30] sm:$0xff]
    %v560 = vld [vmem:[#allocation6 + $0x38] sm:$0xff]
    %v561 = vld [vmem:[#allocation6 + $0x40] sm:$0xff]
    %v562 = vld [vmem:[#allocation6 + $0x48] sm:$0xff]
    %v563 = vld [vmem:[#allocation6 + $0x50] sm:$0xff]
    %v564 = vld [vmem:[#allocation6 + $0x58] sm:$0xff]
    %v565 = vld [vmem:[#allocation6 + $0x60] sm:$0xff]
    %v566 = vld [vmem:[#allocation6 + $0x68] sm:$0xff]
    %v567 = vld [vmem:[#allocation6 + $0x70] sm:$0xff]
    %v568 = vld [vmem:[#allocation6 + $0x78] sm:$0xff]
    %v569 = vld [vmem:[#allocation2 + $0x2] sm:$0xff]
    %v570 = vld [vmem:[#allocation2 + $0xa] sm:$0xff]
    %v571 = vld [vmem:[#allocation2 + $0x12] sm:$0xf]
    %s572 = scalar_lea.vmem [#allocation6], 128
    %v573 = vld [vmem:[%s572] sm:$0xff]
    %v574 = vld [vmem:[%s572 + $0x8] sm:$0xff]
    %v575 = vld [vmem:[%s572 + $0x10] sm:$0xff]
    %v576 = vld [vmem:[%s572 + $0x18] sm:$0xff]
    %v577 = vld [vmem:[%s572 + $0x20] sm:$0xff]
    %v578 = vld [vmem:[%s572 + $0x28] sm:$0xff]
    %v579 = vld [vmem:[%s572 + $0x30] sm:$0xff]
    %v580 = vld [vmem:[%s572 + $0x38] sm:$0xff]
    %v581 = vld [vmem:[%s572 + $0x40] sm:$0xff]
    %v582 = vld [vmem:[%s572 + $0x48] sm:$0xff]
    %v583 = vld [vmem:[%s572 + $0x50] sm:$0xff]
    %v584 = vld [vmem:[%s572 + $0x58] sm:$0xff]
    %v585 = vld [vmem:[%s572 + $0x60] sm:$0xff]
    %v586 = vld [vmem:[%s572 + $0x68] sm:$0xff]
    %v587 = vld [vmem:[%s572 + $0x70] sm:$0xff]
    %v588 = vld [vmem:[%s572 + $0x78] sm:$0xff]
    %589 = vmatprep.subr.mxu0 0.0
    %590 = vmatpush1.msra.mxu0 %v573
    %591 = vmatprep.subr.mxu0 0.0
    %592 = vmatpush1.msra.mxu0 %v574
    %593 = vmatprep.subr.mxu0 0.0
    %594 = vmatpush1.msra.mxu0 %v575
    %595 = vmatprep.subr.mxu0 0.0
    %596 = vmatpush1.msra.mxu0 %v576
    %597 = vmatprep.subr.mxu0 0.0
    %598 = vmatpush1.msra.mxu0 %v577
    %599 = vmatprep.subr.mxu0 0.0
    %600 = vmatpush1.msra.mxu0 %v578
    %601 = vmatprep.subr.mxu0 0.0
    %602 = vmatpush1.msra.mxu0 %v579
    %603 = vmatprep.subr.mxu0 0.0
    %604 = vmatpush1.msra.mxu0 %v580
    %605 = vmatprep.subr.mxu0 0.0
    %606 = vmatpush1.msra.mxu0 %v581
    %607 = vmatprep.subr.mxu0 0.0
    %608 = vmatpush1.msra.mxu0 %v582
    %609 = vmatprep.subr.mxu0 0.0
    %610 = vmatpush1.msra.mxu0 %v583
    %611 = vmatprep.subr.mxu0 0.0
    %612 = vmatpush1.msra.mxu0 %v584
    %613 = vmatprep.subr.mxu0 0.0
    %614 = vmatpush1.msra.mxu0 %v585
    %615 = vmatprep.subr.mxu0 0.0
    %616 = vmatpush1.msra.mxu0 %v586
    %617 = vmatprep.subr.mxu0 0.0
    %618 = vmatpush1.msra.mxu0 %v587
    %619 = vmatprep.subr.mxu0 0.0
    %620 = vmatpush1.msra.mxu0 %v588
    %621 = vmatprep.subr.mxu0 0.0
    %622 = vmatpush1.msra.mxu0 0.0
    %623 = vmatprep.subr.mxu0 0.0
    %624 = vmatpush1.msra.mxu0 0.0
    %625 = vmatprep.subr.mxu0 0.0
    %626 = vmatpush1.msra.mxu0 0.0
    %627 = vmatprep.subr.mxu0 0.0
    %628 = vmatpush1.msra.mxu0 0.0
    %629 = vmatprep.subr.mxu0 0.0
    %630 = vmatpush1.msra.mxu0 0.0
    %631 = vmatprep.subr.mxu0 0.0
    %632 = vmatpush1.msra.mxu0 0.0
    %633 = vmatprep.subr.mxu0 0.0
    %634 = vmatpush1.msra.mxu0 0.0
    %635 = vmatprep.subr.mxu0 0.0
    %636 = vmatpush1.msra.mxu0 0.0
    %637 = vmatprep.subr.mxu0 0.0
    %638 = vmatpush1.msra.mxu0 0.0
    %639 = vmatprep.subr.mxu0 0.0
    %640 = vmatpush1.msra.mxu0 0.0
    %641 = vmatprep.subr.mxu0 0.0
    %642 = vmatpush1.msra.mxu0 0.0
    %643 = vmatprep.subr.mxu0 0.0
    %644 = vmatpush1.msra.mxu0 0.0
    %645 = vmatprep.subr.mxu0 0.0
    %646 = vmatpush1.msra.mxu0 0.0
    %647 = vmatprep.subr.mxu0 0.0
    %648 = vmatpush1.msra.mxu0 0.0
    %649 = vmatprep.subr.mxu0 0.0
    %650 = vmatpush1.msra.mxu0 0.0
    %651 = vmatprep.subr.mxu0 0.0
    %652 = vmatpush1.msra.mxu0 0.0
    %653 = vmatprep.mubr.f32.mxu0 0.0
    %654 = vmatmul.mubr.f32.gmra.mrb[0].mxu0 %v569
    %v655 = vpop.f32.mrb[0].mxu0
    %v656 = vadd.f32 0.0, %v655
    %v657 = vpop.f32.mrb[0].mxu0
    %658 = vmatprep.mubr.f32.mxu0 0.0
    %659 = vmatmul.mubr.f32.gmra.mrb[0].mxu0 %v570
    %v660 = vpop.f32.mrb[0].mxu0
    %v661 = vadd.f32 0.0, %v660
    %v662 = vpop.f32.mrb[0].mxu0
    %663 = vmatprep.mubr.f32.mxu0 0.0
    %664 = vmatmul.mubr.f32.gmra.mrb[0].mxu0 %v571
    %v665 = vpop.f32.mrb[0].mxu0
    %v666 = vadd.f32 0.0, %v665
    %v667 = vpop.f32.mrb[0].mxu0
    %668 = vdwg.mxu0
    %669 = vmatprep.subr.mxu0 0.0
    %670 = vmatpush1.msra.mxu0 %v553
    %671 = vmatprep.subr.mxu0 0.0
    %672 = vmatpush1.msra.mxu0 %v554
    %673 = vmatprep.subr.mxu0 0.0
    %674 = vmatpush1.msra.mxu0 %v555
    %675 = vmatprep.subr.mxu0 0.0
    %676 = vmatpush1.msra.mxu0 %v556
    %677 = vmatprep.subr.mxu0 0.0
    %678 = vmatpush1.msra.mxu0 %v557
    %679 = vmatprep.subr.mxu0 0.0
    %680 = vmatpush1.msra.mxu0 %v558
    %681 = vmatprep.subr.mxu0 0.0
    %682 = vmatpush1.msra.mxu0 %v559
    %683 = vmatprep.subr.mxu0 0.0
    %684 = vmatpush1.msra.mxu0 %v560
    %685 = vmatprep.subr.mxu0 0.0
    %686 = vmatpush1.msra.mxu0 %v561
    %687 = vmatprep.subr.mxu0 0.0
    %688 = vmatpush1.msra.mxu0 %v562
    %689 = vmatprep.subr.mxu0 0.0
    %690 = vmatpush1.msra.mxu0 %v563
    %691 = vmatprep.subr.mxu0 0.0
    %692 = vmatpush1.msra.mxu0 %v564
    %693 = vmatprep.subr.mxu0 0.0
    %694 = vmatpush1.msra.mxu0 %v565
    %695 = vmatprep.subr.mxu0 0.0
    %696 = vmatpush1.msra.mxu0 %v566
    %697 = vmatprep.subr.mxu0 0.0
    %698 = vmatpush1.msra.mxu0 %v567
    %699 = vmatprep.subr.mxu0 0.0
    %700 = vmatpush1.msra.mxu0 %v568
    %701 = vmatprep.subr.mxu0 0.0
    %702 = vmatpush1.msra.mxu0 0.0
    %703 = vmatprep.subr.mxu0 0.0
    %704 = vmatpush1.msra.mxu0 0.0
    %705 = vmatprep.subr.mxu0 0.0
    %706 = vmatpush1.msra.mxu0 0.0
    %707 = vmatprep.subr.mxu0 0.0
    %708 = vmatpush1.msra.mxu0 0.0
    %709 = vmatprep.subr.mxu0 0.0
    %710 = vmatpush1.msra.mxu0 0.0
    %711 = vmatprep.subr.mxu0 0.0
    %712 = vmatpush1.msra.mxu0 0.0
    %713 = vmatprep.subr.mxu0 0.0
    %714 = vmatpush1.msra.mxu0 0.0
    %715 = vmatprep.subr.mxu0 0.0
    %716 = vmatpush1.msra.mxu0 0.0
    %717 = vmatprep.subr.mxu0 0.0
    %718 = vmatpush1.msra.mxu0 0.0
    %719 = vmatprep.subr.mxu0 0.0
    %720 = vmatpush1.msra.mxu0 0.0
    %721 = vmatprep.subr.mxu0 0.0
    %722 = vmatpush1.msra.mxu0 0.0
    %723 = vmatprep.subr.mxu0 0.0
    %724 = vmatpush1.msra.mxu0 0.0
    %725 = vmatprep.subr.mxu0 0.0
    %726 = vmatpush1.msra.mxu0 0.0
    %727 = vmatprep.subr.mxu0 0.0
    %728 = vmatpush1.msra.mxu0 0.0
    %729 = vmatprep.subr.mxu0 0.0
    %730 = vmatpush1.msra.mxu0 0.0
    %731 = vmatprep.subr.mxu0 0.0
    %732 = vmatpush1.msra.mxu0 0.0
    %733 = vmatprep.mubr.f32.mxu0 0.0
    %734 = vmatmul.mubr.f32.gmra.mrb[0].mxu0 %v550
    %v735 = vpop.f32.mrb[0].mxu0
    %v736 = vadd.f32 %v656, %v735
    %v737 = vpop.f32.mrb[0].mxu0
    %738 = vmatprep.mubr.f32.mxu0 0.0
    %739 = vmatmul.mubr.f32.gmra.mrb[0].mxu0 %v551
    %v740 = vpop.f32.mrb[0].mxu0
    %v741 = vadd.f32 %v661, %v740
    %v742 = vpop.f32.mrb[0].mxu0
    %743 = vmatprep.mubr.f32.mxu0 0.0
    %744 = vmatmul.mubr.f32.gmra.mrb[0].mxu0 %v552
    %v745 = vpop.f32.mrb[0].mxu0
    %v746 = vadd.f32 %v666, %v745
    %v747 = vpop.f32.mrb[0].mxu0
    %748 = vdwg.mxu0
    %v749 = vld [vmem:[%s7] sm:$0x1]
    %v751 = vlaneseq
    %v752 = vshrl.u32 %v751, 7
    %v753 = vsub.s32 0, %v752
    %v754 = vrot.slane %v749, %v753
    %v756 = vadd.f32 %v736, %v754
    %v757 = vadd.f32 %v741, %v754
    %v758 = vadd.f32 %v746, %v754
    %v759 = vmax.f32 %v756, 0.0
    %v760 = vmax.f32 %v757, 0.0
    %v761 = vmax.f32 %v758, 0.0
    %v762 = vmul.f32 %v759, %v305
    %v763 = vmul.f32 %v760, %v310
    %v764 = vmul.f32 %v761, %v315
    %765 = vst [vmem:[#allocation3 + $0x2] sm:$0xff] %v762
    %766 = vst [vmem:[#allocation3 + $0xa] sm:$0xff] %v763
    %767 = vst [vmem:[#allocation3 + $0x12] sm:$0xf] %v764
    %v768 = vld [vmem:[#allocation2 + $0x2] sm:$0xff]
    %v769 = vld [vmem:[#allocation2 + $0xa] sm:$0xff]
    %v770 = vld [vmem:[#allocation2 + $0x12] sm:$0xf]
    %v771 = vld [vmem:[#allocation3] sm:$0xff]
    %v772 = vld [vmem:[#allocation3 + $0x8] sm:$0xff]
    %v773 = vld [vmem:[#allocation3 + $0x10] sm:$0xf]
    %v774 = vld [vmem:[#allocation8] sm:$0xff]
    %v775 = vld [vmem:[#allocation8 + $0x8] sm:$0xff]
    %v776 = vld [vmem:[#allocation8 + $0x10] sm:$0xff]
    %v777 = vld [vmem:[#allocation8 + $0x18] sm:$0xff]
    %v778 = vld [vmem:[#allocation8 + $0x20] sm:$0xff]
    %v779 = vld [vmem:[#allocation8 + $0x28] sm:$0xff]
    %v780 = vld [vmem:[#allocation8 + $0x30] sm:$0xff]
    %v781 = vld [vmem:[#allocation8 + $0x38] sm:$0xff]
    %v782 = vld [vmem:[#allocation8 + $0x40] sm:$0xff]
    %v783 = vld [vmem:[#allocation8 + $0x48] sm:$0xff]
    %v784 = vld [vmem:[#allocation8 + $0x50] sm:$0xff]
    %v785 = vld [vmem:[#allocation8 + $0x58] sm:$0xff]
    %v786 = vld [vmem:[#allocation8 + $0x60] sm:$0xff]
    %v787 = vld [vmem:[#allocation8 + $0x68] sm:$0xff]
    %v788 = vld [vmem:[#allocation8 + $0x70] sm:$0xff]
    %v789 = vld [vmem:[#allocation8 + $0x78] sm:$0xff]
    %v790 = vld [vmem:[#allocation3 + $0x2] sm:$0xff]
    %v791 = vld [vmem:[#allocation3 + $0xa] sm:$0xff]
    %v792 = vld [vmem:[#allocation3 + $0x12] sm:$0xf]
    %s793 = scalar_lea.vmem [#allocation8], 128
    %v794 = vld [vmem:[%s793] sm:$0xff]
    %v795 = vld [vmem:[%s793 + $0x8] sm:$0xff]
    %v796 = vld [vmem:[%s793 + $0x10] sm:$0xff]
    %v797 = vld [vmem:[%s793 + $0x18] sm:$0xff]
    %v798 = vld [vmem:[%s793 + $0x20] sm:$0xff]
    %v799 = vld [vmem:[%s793 + $0x28] sm:$0xff]
    %v800 = vld [vmem:[%s793 + $0x30] sm:$0xff]
    %v801 = vld [vmem:[%s793 + $0x38] sm:$0xff]
    %v802 = vld [vmem:[%s793 + $0x40] sm:$0xff]
    %v803 = vld [vmem:[%s793 + $0x48] sm:$0xff]
    %v804 = vld [vmem:[%s793 + $0x50] sm:$0xff]
    %v805 = vld [vmem:[%s793 + $0x58] sm:$0xff]
    %v806 = vld [vmem:[%s793 + $0x60] sm:$0xff]
    %v807 = vld [vmem:[%s793 + $0x68] sm:$0xff]
    %v808 = vld [vmem:[%s793 + $0x70] sm:$0xff]
    %v809 = vld [vmem:[%s793 + $0x78] sm:$0xff]
    %810 = vmatprep.subr.mxu0 0.0
    %811 = vmatpush1.msra.mxu0 %v794
    %812 = vmatprep.subr.mxu0 0.0
    %813 = vmatpush1.msra.mxu0 %v795
    %814 = vmatprep.subr.mxu0 0.0
    %815 = vmatpush1.msra.mxu0 %v796
    %816 = vmatprep.subr.mxu0 0.0
    %817 = vmatpush1.msra.mxu0 %v797
    %818 = vmatprep.subr.mxu0 0.0
    %819 = vmatpush1.msra.mxu0 %v798
    %820 = vmatprep.subr.mxu0 0.0
    %821 = vmatpush1.msra.mxu0 %v799
    %822 = vmatprep.subr.mxu0 0.0
    %823 = vmatpush1.msra.mxu0 %v800
    %824 = vmatprep.subr.mxu0 0.0
    %825 = vmatpush1.msra.mxu0 %v801
    %826 = vmatprep.subr.mxu0 0.0
    %827 = vmatpush1.msra.mxu0 %v802
    %828 = vmatprep.subr.mxu0 0.0
    %829 = vmatpush1.msra.mxu0 %v803
    %830 = vmatprep.subr.mxu0 0.0
    %831 = vmatpush1.msra.mxu0 %v804
    %832 = vmatprep.subr.mxu0 0.0
    %833 = vmatpush1.msra.mxu0 %v805
    %834 = vmatprep.subr.mxu0 0.0
    %835 = vmatpush1.msra.mxu0 %v806
    %836 = vmatprep.subr.mxu0 0.0
    %837 = vmatpush1.msra.mxu0 %v807
    %838 = vmatprep.subr.mxu0 0.0
    %839 = vmatpush1.msra.mxu0 %v808
    %840 = vmatprep.subr.mxu0 0.0
    %841 = vmatpush1.msra.mxu0 %v809
    %842 = vmatprep.subr.mxu0 0.0
    %843 = vmatpush1.msra.mxu0 0.0
    %844 = vmatprep.subr.mxu0 0.0
    %845 = vmatpush1.msra.mxu0 0.0
    %846 = vmatprep.subr.mxu0 0.0
    %847 = vmatpush1.msra.mxu0 0.0
    %848 = vmatprep.subr.mxu0 0.0
    %849 = vmatpush1.msra.mxu0 0.0
    %850 = vmatprep.subr.mxu0 0.0
    %851 = vmatpush1.msra.mxu0 0.0
    %852 = vmatprep.subr.mxu0 0.0
    %853 = vmatpush1.msra.mxu0 0.0
    %854 = vmatprep.subr.mxu0 0.0
    %855 = vmatpush1.msra.mxu0 0.0
    %856 = vmatprep.subr.mxu0 0.0
    %857 = vmatpush1.msra.mxu0 0.0
    %858 = vmatprep.subr.mxu0 0.0
    %859 = vmatpush1.msra.mxu0 0.0
    %860 = vmatprep.subr.mxu0 0.0
    %861 = vmatpush1.msra.mxu0 0.0
    %862 = vmatprep.subr.mxu0 0.0
    %863 = vmatpush1.msra.mxu0 0.0
    %864 = vmatprep.subr.mxu0 0.0
    %865 = vmatpush1.msra.mxu0 0.0
    %866 = vmatprep.subr.mxu0 0.0
    %867 = vmatpush1.msra.mxu0 0.0
    %868 = vmatprep.subr.mxu0 0.0
    %869 = vmatpush1.msra.mxu0 0.0
    %870 = vmatprep.subr.mxu0 0.0
    %871 = vmatpush1.msra.mxu0 0.0
    %872 = vmatprep.subr.mxu0 0.0
    %873 = vmatpush1.msra.mxu0 0.0
    %874 = vmatprep.mubr.f32.mxu0 0.0
    %875 = vmatmul.mubr.f32.gmra.mrb[0].mxu0 %v790
    %v876 = vpop.f32.mrb[0].mxu0
    %v877 = vadd.f32 0.0, %v876
    %v878 = vpop.f32.mrb[0].mxu0
    %879 = vmatprep.mubr.f32.mxu0 0.0
    %880 = vmatmul.mubr.f32.gmra.mrb[0].mxu0 %v791
    %v881 = vpop.f32.mrb[0].mxu0
    %v882 = vadd.f32 0.0, %v881
    %v883 = vpop.f32.mrb[0].mxu0
    %884 = vmatprep.mubr.f32.mxu0 0.0
    %885 = vmatmul.mubr.f32.gmra.mrb[0].mxu0 %v792
    %v886 = vpop.f32.mrb[0].mxu0
    %v887 = vadd.f32 0.0, %v886
    %v888 = vpop.f32.mrb[0].mxu0
    %889 = vdwg.mxu0
    %890 = vmatprep.subr.mxu0 0.0
    %891 = vmatpush1.msra.mxu0 %v774
    %892 = vmatprep.subr.mxu0 0.0
    %893 = vmatpush1.msra.mxu0 %v775
    %894 = vmatprep.subr.mxu0 0.0
    %895 = vmatpush1.msra.mxu0 %v776
    %896 = vmatprep.subr.mxu0 0.0
    %897 = vmatpush1.msra.mxu0 %v777
    %898 = vmatprep.subr.mxu0 0.0
    %899 = vmatpush1.msra.mxu0 %v778
    %900 = vmatprep.subr.mxu0 0.0
    %901 = vmatpush1.msra.mxu0 %v779
    %902 = vmatprep.subr.mxu0 0.0
    %903 = vmatpush1.msra.mxu0 %v780
    %904 = vmatprep.subr.mxu0 0.0
    %905 = vmatpush1.msra.mxu0 %v781
    %906 = vmatprep.subr.mxu0 0.0
    %907 = vmatpush1.msra.mxu0 %v782
    %908 = vmatprep.subr.mxu0 0.0
    %909 = vmatpush1.msra.mxu0 %v783
    %910 = vmatprep.subr.mxu0 0.0
    %911 = vmatpush1.msra.mxu0 %v784
    %912 = vmatprep.subr.mxu0 0.0
    %913 = vmatpush1.msra.mxu0 %v785
    %914 = vmatprep.subr.mxu0 0.0
    %915 = vmatpush1.msra.mxu0 %v786
    %916 = vmatprep.subr.mxu0 0.0
    %917 = vmatpush1.msra.mxu0 %v787
    %918 = vmatprep.subr.mxu0 0.0
    %919 = vmatpush1.msra.mxu0 %v788
    %920 = vmatprep.subr.mxu0 0.0
    %921 = vmatpush1.msra.mxu0 %v789
    %922 = vmatprep.subr.mxu0 0.0
    %923 = vmatpush1.msra.mxu0 0.0
    %924 = vmatprep.subr.mxu0 0.0
    %925 = vmatpush1.msra.mxu0 0.0
    %926 = vmatprep.subr.mxu0 0.0
    %927 = vmatpush1.msra.mxu0 0.0
    %928 = vmatprep.subr.mxu0 0.0
    %929 = vmatpush1.msra.mxu0 0.0
    %930 = vmatprep.subr.mxu0 0.0
    %931 = vmatpush1.msra.mxu0 0.0
    %932 = vmatprep.subr.mxu0 0.0
    %933 = vmatpush1.msra.mxu0 0.0
    %934 = vmatprep.subr.mxu0 0.0
    %935 = vmatpush1.msra.mxu0 0.0
    %936 = vmatprep.subr.mxu0 0.0
    %937 = vmatpush1.msra.mxu0 0.0
    %938 = vmatprep.subr.mxu0 0.0
    %939 = vmatpush1.msra.mxu0 0.0
    %940 = vmatprep.subr.mxu0 0.0
    %941 = vmatpush1.msra.mxu0 0.0
    %942 = vmatprep.subr.mxu0 0.0
    %943 = vmatpush1.msra.mxu0 0.0
    %944 = vmatprep.subr.mxu0 0.0
    %945 = vmatpush1.msra.mxu0 0.0
    %946 = vmatprep.subr.mxu0 0.0
    %947 = vmatpush1.msra.mxu0 0.0
    %948 = vmatprep.subr.mxu0 0.0
    %949 = vmatpush1.msra.mxu0 0.0
    %950 = vmatprep.subr.mxu0 0.0
    %951 = vmatpush1.msra.mxu0 0.0
    %952 = vmatprep.subr.mxu0 0.0
    %953 = vmatpush1.msra.mxu0 0.0
    %954 = vmatprep.mubr.f32.mxu0 0.0
    %955 = vmatmul.mubr.f32.gmra.mrb[0].mxu0 %v771
    %v956 = vpop.f32.mrb[0].mxu0
    %v957 = vadd.f32 %v877, %v956
    %v958 = vpop.f32.mrb[0].mxu0
    %959 = vmatprep.mubr.f32.mxu0 0.0
    %960 = vmatmul.mubr.f32.gmra.mrb[0].mxu0 %v772
    %v961 = vpop.f32.mrb[0].mxu0
    %v962 = vadd.f32 %v882, %v961
    %v963 = vpop.f32.mrb[0].mxu0
    %964 = vmatprep.mubr.f32.mxu0 0.0
    %965 = vmatmul.mubr.f32.gmra.mrb[0].mxu0 %v773
    %v966 = vpop.f32.mrb[0].mxu0
    %v967 = vadd.f32 %v887, %v966
    %v968 = vpop.f32.mrb[0].mxu0
    %969 = vdwg.mxu0
    %v970 = vld [vmem:[%s9] sm:$0x1]
    %v972 = vlaneseq
    %v973 = vshrl.u32 %v972, 7
    %v974 = vsub.s32 0, %v973
    %v975 = vrot.slane %v970, %v974
    %v977 = vadd.f32 %v957, %v975
    %v978 = vadd.f32 %v962, %v975
    %v979 = vadd.f32 %v967, %v975
    %v980 = vmax.f32 %v977, 0.0
    %v981 = vmax.f32 %v978, 0.0
    %v982 = vmax.f32 %v979, 0.0
    %v983 = vadd.f32 %v980, %v768
    %v984 = vadd.f32 %v981, %v769
    %v985 = vadd.f32 %v982, %v770
    %v986 = vmax.f32 %v983, 0.0
    %v987 = vmax.f32 %v984, 0.0
    %v988 = vmax.f32 %v985, 0.0
    %v989 = vmul.f32 %v986, %v305
    %v990 = vmul.f32 %v987, %v310
    %v991 = vmul.f32 %v988, %v315
    %992 = vst [vmem:[#allocation2 + $0x2] sm:$0xff] %v989
    %993 = vst [vmem:[#allocation2 + $0xa] sm:$0xff] %v990
    %994 = vst [vmem:[#allocation2 + $0x12] sm:$0xf] %v991
    %v995 = vld [vmem:[#allocation2 + $0x4] sm:$0xff]
    %996 = vst [vmem:[%s10] sm:$0xff] %v995
    %v997 = vld [vmem:[#allocation2 + $0xe] sm:$0xff]
    %s998 = scalar_lea.vmem %s10, 8
    %999 = vst [vmem:[%s998] sm:$0xff] %v997
    // Predicated region
    $region54: #{temporal_conv_net_2d.1} parent=1 // pred_check
      _
    $region55: #{temporal_conv_net_2d.1} parent=1 // pred_check_branch
      %1001 = sbr.rel (0) target = $region57
    $region56: #{temporal_conv_net_2d.1} parent=1 // pred_region
      _
    $region57: #{temporal_conv_net_2d.1} parent=1 // pred_fallthru
      _
    // Predicated region
    $region58: #{temporal_conv_net_2d.1} parent=1 // pred_check
      _
    $region59: #{temporal_conv_net_2d.1} parent=1 // pred_check_branch
      %1003 = sbr.rel (0) target = $region61
    $region60: #{temporal_conv_net_2d.1} parent=1 // pred_region
      _
    $region61: #{temporal_conv_net_2d.1} parent=1 // pred_fallthru
      _
    %1004 = vsyncpa [#allocation5], 1
    %1005 = vsyncpa [#allocation7], 1

</llo_original>
